<compile_context>
chip_gen: v6e
topology: v6e:2x2x1
jax: 0.10.0
libtpu: 0.0.40
codegen_flags: <defaults>
</compile_context>

<pallas_src>
import functools

import jax
import jax.numpy as jnp
from jax.experimental import pallas as pl
from jax.experimental.pallas import tpu as pltpu

HIDDEN = 64
NUM_LAYERS = 2
NUM_CLASSES = 11
INPUT_SIZE = 1
FC_PAD = 128  # lane-dense fc output width (>= NUM_CLASSES, multiple of 128)


def _toy_lstm_kernel(x_ref, slab_ref, fc_ref, out_ref, scr_ref, *, T, B, H):
    # x_ref:    ((T+1)*B, 1)   time-major flattened input, extra zero block at the end
    # slab_ref: (2H+16, 8H)    rows 0:2H   = fused weight [whh0|0 ; wih1;whh1], gate-interleaved
    #                          row  2H     = wih0 (layer-0 input weight; layer-1 lanes zero)
    #                          row  2H+8   = summed biases [b0|b1], gate-interleaved
    # fc_ref:   (2H+8, 128)    rows 0:2H   = fc weight (rows 0:H zero, rows H:2H = W_fc.T padded)
    #                          row  2H     = fc bias (padded)
    # out_ref:  (B, 128)
    # scr_ref:  ((T+1)*B, 8H)  hoisted per-timestep additive gate terms
    W = slab_ref[0:2 * H, :]                 # (2H, 8H) fused recurrent weight
    wih0 = slab_ref[2 * H:2 * H + 1, :]      # (1, 8H)
    bias = slab_ref[2 * H + 8:2 * H + 9, :]  # (1, 8H)

    # Hoisted off the recurrence chain: for each time block t,
    #   layer-0 lanes = x(t)*W_ih0 + b0, layer-1 lanes = b1  (wih0's layer-1 lanes are zero).
    scr_ref[...] = x_ref[...] * wih0 + bias            # ((T+1)*B, 8H)

    # ---- prologue: layer-0 at t=0 (h0 = c0 = 0, gates = scr block 0) ----
    t0 = jnp.tanh(0.5 * scr_ref[0:B, :])
    i0 = 0.5 * t0[:, 0 * H:1 * H] + 0.5
    o0 = 0.5 * t0[:, 4 * H:5 * H] + 0.5
    g0 = t0[:, 6 * H:7 * H]
    c0 = i0 * g0
    h0 = o0 * jnp.tanh(c0)
    zeros = jnp.zeros((B, H), jnp.float32)
    h = jnp.concatenate([h0, zeros], axis=-1)          # [h0(0) | h1(-1)=0]
    c = jnp.concatenate([c0, zeros], axis=-1)          # [c0(0) | c1(-1)=0]

    # ---- wavefront loop: iteration t updates layer-1(t) and layer-0(t+1) together ----
    def step(t, carry):
        h, c = carry
        fused = jnp.dot(h, W, preferred_element_type=jnp.float32)   # (B, 8H)
        base = pl.multiple_of((t + 1) * B, 8)
        gates = fused + scr_ref[pl.ds(base, B), :]
        tt = jnp.tanh(0.5 * gates)                      # single full-width EUP stream
        sig = 0.5 * tt[:, 0:6 * H] + 0.5                # i/f/o via sigmoid identity
        i_pk = sig[:, 0 * H:2 * H]
        f_pk = sig[:, 2 * H:4 * H]
        o_pk = sig[:, 4 * H:6 * H]
        g_pk = tt[:, 6 * H:8 * H]                       # g columns were pre-scaled by 2
        c = f_pk * c + i_pk * g_pk                      # packed [c0(t+1) | c1(t)]
        h = o_pk * jnp.tanh(c)                          # packed [h0(t+1) | h1(t)]
        return (h, c)

    h, _ = jax.lax.fori_loop(0, T, step, (h, c), unroll=True)

    # final Linear on hn[-1] = h1(T-1): fc weight rows 0:H are zero, so the unused
    # layer-0 lanes of h contribute nothing.  Written lane-dense (padded to 128 cols).
    out_ref[...] = (jnp.dot(h, fc_ref[0:2 * H, :], preferred_element_type=jnp.float32)
                    + fc_ref[2 * H:2 * H + 1, :])


def pack_params(params):
    """One-time weight preprocessing (hoisted out of the per-call path)."""
    H, C = HIDDEN, NUM_CLASSES
    # PyTorch gate order (i, f, g, o) -> (i, f, o, g)
    perm = jnp.concatenate([jnp.arange(0, 2 * H),
                            jnp.arange(3 * H, 4 * H),
                            jnp.arange(2 * H, 3 * H)])
    # pre-scale g columns by 2 so tanh(0.5*gates) gives tanh(g_pre) directly
    gscale = jnp.ones((4 * H,), jnp.float32).at[3 * H:].set(2.0)

    def prep(w):  # (4H, in) -> (in, 4H) permuted + g-scaled
        return w.T[:, perm] * gscale[None, :]

    whh0 = prep(params["w_hh0"])                                     # (H, 4H)
    wih0 = prep(params["w_ih0"])                                     # (1, 4H)
    b0 = ((params["b_ih0"] + params["b_hh0"])[perm] * gscale)[None]  # (1, 4H)
    wl1 = jnp.concatenate([prep(params["w_ih1"]), prep(params["w_hh1"])], axis=0)  # (2H, 4H)
    b1 = ((params["b_ih1"] + params["b_hh1"])[perm] * gscale)[None]  # (1, 4H)

    def interleave(a, b):  # (R,4H),(R,4H) -> (R,8H) per-gate [a_k | b_k]
        R = a.shape[0]
        return jnp.stack([a.reshape(R, 4, H), b.reshape(R, 4, H)], axis=2).reshape(R, 8 * H)

    w_fused = interleave(
        jnp.concatenate([whh0, jnp.zeros((H, 4 * H), jnp.float32)], axis=0), wl1)  # (2H, 8H)
    wih0_i = interleave(wih0, jnp.zeros((1, 4 * H), jnp.float32))                  # (1, 8H)
    bias_i = interleave(b0, b1)                                                    # (1, 8H)

    slab = jnp.zeros((2 * H + 16, 8 * H), jnp.float32)   # 8-row aligned segments
    slab = slab.at[:2 * H, :].set(w_fused)
    slab = slab.at[2 * H, :].set(wih0_i[0])
    slab = slab.at[2 * H + 8, :].set(bias_i[0])

    wfc = jnp.zeros((2 * H, FC_PAD), jnp.float32).at[H:2 * H, :C].set(params["w_fc"].T)
    fc_slab = jnp.zeros((2 * H + 8, FC_PAD), jnp.float32)
    fc_slab = fc_slab.at[:2 * H, :].set(wfc)
    fc_slab = fc_slab.at[2 * H, :C].set(params["b_fc"])
    return {"slab": slab, "fc_slab": fc_slab}


def toy_lstm_forward(x, packed):
    """x: (B, T) float32 -- matches torch forward which does x.unsqueeze(-1)."""
    B, T = x.shape
    H = HIDDEN
    Bp = ((B + 7) // 8) * 8                              # pad batch to sublane multiple

    # Time-major, batch-padded, with one extra zero timestep block (t=T) at the end
    # so the wavefront loop's final (discarded) layer-0 update stays well-defined.
    x_tm = jnp.zeros((T + 1, Bp), jnp.float32).at[:T, :B].set(
        jnp.transpose(x, (1, 0)).astype(jnp.float32))
    x_flat = x_tm.reshape((T + 1) * Bp, 1)

    kernel = functools.partial(_toy_lstm_kernel, T=T, B=Bp, H=H)
    vmem = pl.BlockSpec(memory_space=pltpu.MemorySpace.VMEM)
    out = pl.pallas_call(
        kernel,
        out_shape=jax.ShapeDtypeStruct((Bp, FC_PAD), jnp.float32),
        in_specs=[vmem] * 3,
        out_specs=vmem,
        scratch_shapes=[pltpu.VMEM(((T + 1) * Bp, 8 * H), jnp.float32)],
    )(x_flat, packed["slab"], packed["fc_slab"])
    return out[:B, :NUM_CLASSES]


def toy_lstm_ref(x, params):
    """Pure-JAX reference of the PyTorch forward (eval mode)."""
    H = HIDDEN
    x3 = x[:, :, None].astype(jnp.float32)  # (B, T, 1)

    def lstm_layer(inp, w_ih, w_hh, b_ih, b_hh):
        B = inp.shape[0]

        def step(carry, x_t):
            h, c = carry
            gates = x_t @ w_ih.T + h @ w_hh.T + b_ih + b_hh
            i = jax.nn.sigmoid(gates[:, :H])
            f = jax.nn.sigmoid(gates[:, H:2 * H])
            g = jnp.tanh(gates[:, 2 * H:3 * H])
            o = jax.nn.sigmoid(gates[:, 3 * H:])
            c = f * c + i * g
            h = o * jnp.tanh(c)
            return (h, c), h

        h0 = jnp.zeros((B, H), jnp.float32)
        c0 = jnp.zeros((B, H), jnp.float32)
        (h, _), outs = jax.lax.scan(step, (h0, c0), jnp.transpose(inp, (1, 0, 2)))
        return jnp.transpose(outs, (1, 0, 2)), h

    # TODO(synk): nn.LSTM inter-layer dropout (p=0.2) is train-mode only; eval forward is identity.
    out0, _ = lstm_layer(x3, params["w_ih0"], params["w_hh0"],
                         params["b_ih0"], params["b_hh0"])
    _, h1 = lstm_layer(out0, params["w_ih1"], params["w_hh1"],
                       params["b_ih1"], params["b_hh1"])
    return h1 @ params["w_fc"].T + params["b_fc"]


def init_params(key):
    H, C = HIDDEN, NUM_CLASSES
    ks = jax.random.split(key, 10)
    bound = float(1.0 / (H ** 0.5))
    u = lambda k, shape: jax.random.uniform(k, shape, jnp.float32, -bound, bound)
    return {
        "w_ih0": u(ks[0], (4 * H, INPUT_SIZE)),
        "w_hh0": u(ks[1], (4 * H, H)),
        "b_ih0": u(ks[2], (4 * H,)),
        "b_hh0": u(ks[3], (4 * H,)),
        "w_ih1": u(ks[4], (4 * H, H)),
        "w_hh1": u(ks[5], (4 * H, H)),
        "b_ih1": u(ks[6], (4 * H,)),
        "b_hh1": u(ks[7], (4 * H,)),
        "w_fc": u(ks[8], (C, H)),
        "b_fc": u(ks[9], (C,)),
    }


if __name__ == "__main__":
    key = jax.random.PRNGKey(0)
    kx, kp = jax.random.split(key)
    B, T = 2, 8
    x = jax.random.normal(kx, (B, T), jnp.float32)
    params = init_params(kp)

    packed = jax.block_until_ready(pack_params(params))   # one-time weight prep
    logits = jax.block_until_ready(toy_lstm_forward(x, packed))
    ref = toy_lstm_ref(x, params)

    assert logits.shape == (B, NUM_CLASSES), logits.shape
    assert jnp.allclose(logits, ref, atol=1e-4, rtol=1e-4), (
        f"max abs diff {jnp.max(jnp.abs(logits - ref))}")
    print("KERNEL_OK")
</pallas_src>

<mosaic_0001>
module attributes {stable_mosaic.version = 11 : i64} {
  func.func @_toy_lstm_kernel(%arg0: memref<72x1xf32, #tpu.memory_space<vmem>>, %arg1: memref<144x512xf32, #tpu.memory_space<vmem>>, %arg2: memref<136x128xf32, #tpu.memory_space<vmem>>, %arg3: memref<8x128xf32, #tpu.memory_space<vmem>>, %arg4: memref<72x512xf32, #tpu.memory_space<vmem>>) attributes {dimension_semantics = [], scalar_prefetch = 0 : i64, scratch_operands = 1 : i64, tpu.core_type = #tpu.core_type<tc>} {
    %c0 = arith.constant 0 : index
    %c0_0 = arith.constant 0 : index
    %0 = vector.load %arg1[%c0, %c0_0] : memref<144x512xf32, #tpu.memory_space<vmem>>, vector<128x512xf32>
    %c128 = arith.constant 128 : index
    %c0_1 = arith.constant 0 : index
    %1 = vector.load %arg1[%c128, %c0_1] : memref<144x512xf32, #tpu.memory_space<vmem>>, vector<1x512xf32>
    %c136 = arith.constant 136 : index
    %c0_2 = arith.constant 0 : index
    %2 = vector.load %arg1[%c136, %c0_2] : memref<144x512xf32, #tpu.memory_space<vmem>>, vector<1x512xf32>
    %c0_3 = arith.constant 0 : index
    %c0_4 = arith.constant 0 : index
    %3 = vector.load %arg0[%c0_3, %c0_4] : memref<72x1xf32, #tpu.memory_space<vmem>>, vector<72x1xf32>
    %4 = vector.broadcast %3 : vector<72x1xf32> to vector<72x512xf32>
    %5 = vector.broadcast %1 : vector<1x512xf32> to vector<72x512xf32>
    %6 = arith.mulf %4, %5 : vector<72x512xf32>
    %7 = vector.broadcast %2 : vector<1x512xf32> to vector<72x512xf32>
    %8 = arith.addf %6, %7 : vector<72x512xf32>
    %c0_5 = arith.constant 0 : index
    %c0_6 = arith.constant 0 : index
    %9 = vector.load %arg4[%c0_5, %c0_6] : memref<72x512xf32, #tpu.memory_space<vmem>>, vector<72x512xf32>
    tpu.vector_store %arg4[%c0_5, %c0_6], %8 {strides = array<i32>} : memref<72x512xf32, #tpu.memory_space<vmem>>, vector<72x512xf32>,
    %c0_7 = arith.constant 0 : index
    %c0_8 = arith.constant 0 : index
    %10 = vector.load %arg4[%c0_7, %c0_8] : memref<72x512xf32, #tpu.memory_space<vmem>>, vector<8x512xf32>
    %cst = arith.constant 5.000000e-01 : f32
    %11 = vector.broadcast %cst : f32 to vector<8x512xf32>
    %12 = arith.mulf %11, %10 : vector<8x512xf32>
    %13 = math.tanh %12 : vector<8x512xf32>
    %14 = vector.extract_strided_slice %13 {offsets = [0, 0], sizes = [8, 64], strides = [1, 1]} : vector<8x512xf32> to vector<8x64xf32>
    %cst_9 = arith.constant 5.000000e-01 : f32
    %15 = vector.broadcast %cst_9 : f32 to vector<8x64xf32>
    %16 = arith.mulf %15, %14 : vector<8x64xf32>
    %cst_10 = arith.constant 5.000000e-01 : f32
    %17 = vector.broadcast %cst_10 : f32 to vector<8x64xf32>
    %18 = arith.addf %16, %17 : vector<8x64xf32>
    %19 = vector.extract_strided_slice %13 {offsets = [0, 256], sizes = [8, 64], strides = [1, 1]} : vector<8x512xf32> to vector<8x64xf32>
    %cst_11 = arith.constant 5.000000e-01 : f32
    %20 = vector.broadcast %cst_11 : f32 to vector<8x64xf32>
    %21 = arith.mulf %20, %19 : vector<8x64xf32>
    %cst_12 = arith.constant 5.000000e-01 : f32
    %22 = vector.broadcast %cst_12 : f32 to vector<8x64xf32>
    %23 = arith.addf %21, %22 : vector<8x64xf32>
    %24 = vector.extract_strided_slice %13 {offsets = [0, 384], sizes = [8, 64], strides = [1, 1]} : vector<8x512xf32> to vector<8x64xf32>
    %25 = arith.mulf %18, %24 : vector<8x64xf32>
    %26 = math.tanh %25 : vector<8x64xf32>
    %27 = arith.mulf %23, %26 : vector<8x64xf32>
    %cst_13 = arith.constant 0.000000e+00 : f32
    %28 = vector.broadcast %cst_13 : f32 to vector<8x64xf32>
    %29 = tpu.concatenate %27, %28 in 1 : vector<8x64xf32>, vector<8x64xf32> -> vector<8x128xf32>
    %30 = tpu.concatenate %25, %28 in 1 : vector<8x64xf32>, vector<8x64xf32> -> vector<8x128xf32>
    %c0_i32 = arith.constant 0 : i32
    %cst_14 = arith.constant dense<0.000000e+00> : vector<8x512xf32>
    %31 = tpu.matmul %29, %0, %cst_14 {dimension_numbers = #tpu.dot_dimension_numbers<[1], [0], [0], [1], [0, 0, 1, 1], [], []>} : vector<8x128xf32>, vector<128x512xf32>, vector<8x512xf32> -> vector<8x512xf32>
    %c1_i32 = arith.constant 1 : i32
    %32 = arith.addi %c0_i32, %c1_i32 : i32
    %c8_i32 = arith.constant 8 : i32
    %33 = arith.muli %32, %c8_i32 : i32
    %34 = tpu.assume_multiple %33, 8 : i32
    %35 = arith.index_cast %34 : i32 to index
    %c0_15 = arith.constant 0 : index
    %36 = vector.load %arg4[%35, %c0_15] : memref<72x512xf32, #tpu.memory_space<vmem>>, vector<8x512xf32>
    %37 = arith.addf %31, %36 : vector<8x512xf32>
    %cst_16 = arith.constant 5.000000e-01 : f32
    %38 = vector.broadcast %cst_16 : f32 to vector<8x512xf32>
    %39 = arith.mulf %38, %37 : vector<8x512xf32>
    %40 = math.tanh %39 : vector<8x512xf32>
    %41 = vector.extract_strided_slice %40 {offsets = [0, 0], sizes = [8, 384], strides = [1, 1]} : vector<8x512xf32> to vector<8x384xf32>
    %cst_17 = arith.constant 5.000000e-01 : f32
    %42 = vector.broadcast %cst_17 : f32 to vector<8x384xf32>
    %43 = arith.mulf %42, %41 : vector<8x384xf32>
    %cst_18 = arith.constant 5.000000e-01 : f32
    %44 = vector.broadcast %cst_18 : f32 to vector<8x384xf32>
    %45 = arith.addf %43, %44 : vector<8x384xf32>
    %46 = vector.extract_strided_slice %45 {offsets = [0, 0], sizes = [8, 128], strides = [1, 1]} : vector<8x384xf32> to vector<8x128xf32>
    %47 = vector.extract_strided_slice %45 {offsets = [0, 128], sizes = [8, 128], strides = [1, 1]} : vector<8x384xf32> to vector<8x128xf32>
    %48 = vector.extract_strided_slice %45 {offsets = [0, 256], sizes = [8, 128], strides = [1, 1]} : vector<8x384xf32> to vector<8x128xf32>
    %49 = vector.extract_strided_slice %40 {offsets = [0, 384], sizes = [8, 128], strides = [1, 1]} : vector<8x512xf32> to vector<8x128xf32>
    %50 = arith.mulf %47, %30 : vector<8x128xf32>
    %51 = arith.mulf %46, %49 : vector<8x128xf32>
    %52 = arith.addf %50, %51 : vector<8x128xf32>
    %53 = math.tanh %52 : vector<8x128xf32>
    %54 = arith.mulf %48, %53 : vector<8x128xf32>
    %c1_i32_19 = arith.constant 1 : i32
    %cst_20 = arith.constant dense<0.000000e+00> : vector<8x512xf32>
    %55 = tpu.matmul %54, %0, %cst_20 {dimension_numbers = #tpu.dot_dimension_numbers<[1], [0], [0], [1], [0, 0, 1, 1], [], []>} : vector<8x128xf32>, vector<128x512xf32>, vector<8x512xf32> -> vector<8x512xf32>
    %c1_i32_21 = arith.constant 1 : i32
    %56 = arith.addi %c1_i32_19, %c1_i32_21 : i32
    %c8_i32_22 = arith.constant 8 : i32
    %57 = arith.muli %56, %c8_i32_22 : i32
    %58 = tpu.assume_multiple %57, 8 : i32
    %59 = arith.index_cast %58 : i32 to index
    %c0_23 = arith.constant 0 : index
    %60 = vector.load %arg4[%59, %c0_23] : memref<72x512xf32, #tpu.memory_space<vmem>>, vector<8x512xf32>
    %61 = arith.addf %55, %60 : vector<8x512xf32>
    %cst_24 = arith.constant 5.000000e-01 : f32
    %62 = vector.broadcast %cst_24 : f32 to vector<8x512xf32>
    %63 = arith.mulf %62, %61 : vector<8x512xf32>
    %64 = math.tanh %63 : vector<8x512xf32>
    %65 = vector.extract_strided_slice %64 {offsets = [0, 0], sizes = [8, 384], strides = [1, 1]} : vector<8x512xf32> to vector<8x384xf32>
    %cst_25 = arith.constant 5.000000e-01 : f32
    %66 = vector.broadcast %cst_25 : f32 to vector<8x384xf32>
    %67 = arith.mulf %66, %65 : vector<8x384xf32>
    %cst_26 = arith.constant 5.000000e-01 : f32
    %68 = vector.broadcast %cst_26 : f32 to vector<8x384xf32>
    %69 = arith.addf %67, %68 : vector<8x384xf32>
    %70 = vector.extract_strided_slice %69 {offsets = [0, 0], sizes = [8, 128], strides = [1, 1]} : vector<8x384xf32> to vector<8x128xf32>
    %71 = vector.extract_strided_slice %69 {offsets = [0, 128], sizes = [8, 128], strides = [1, 1]} : vector<8x384xf32> to vector<8x128xf32>
    %72 = vector.extract_strided_slice %69 {offsets = [0, 256], sizes = [8, 128], strides = [1, 1]} : vector<8x384xf32> to vector<8x128xf32>
    %73 = vector.extract_strided_slice %64 {offsets = [0, 384], sizes = [8, 128], strides = [1, 1]} : vector<8x512xf32> to vector<8x128xf32>
    %74 = arith.mulf %71, %52 : vector<8x128xf32>
    %75 = arith.mulf %70, %73 : vector<8x128xf32>
    %76 = arith.addf %74, %75 : vector<8x128xf32>
    %77 = math.tanh %76 : vector<8x128xf32>
    %78 = arith.mulf %72, %77 : vector<8x128xf32>
    %c2_i32 = arith.constant 2 : i32
    %cst_27 = arith.constant dense<0.000000e+00> : vector<8x512xf32>
    %79 = tpu.matmul %78, %0, %cst_27 {dimension_numbers = #tpu.dot_dimension_numbers<[1], [0], [0], [1], [0, 0, 1, 1], [], []>} : vector<8x128xf32>, vector<128x512xf32>, vector<8x512xf32> -> vector<8x512xf32>
    %c1_i32_28 = arith.constant 1 : i32
    %80 = arith.addi %c2_i32, %c1_i32_28 : i32
    %c8_i32_29 = arith.constant 8 : i32
    %81 = arith.muli %80, %c8_i32_29 : i32
    %82 = tpu.assume_multiple %81, 8 : i32
    %83 = arith.index_cast %82 : i32 to index
    %c0_30 = arith.constant 0 : index
    %84 = vector.load %arg4[%83, %c0_30] : memref<72x512xf32, #tpu.memory_space<vmem>>, vector<8x512xf32>
    %85 = arith.addf %79, %84 : vector<8x512xf32>
    %cst_31 = arith.constant 5.000000e-01 : f32
    %86 = vector.broadcast %cst_31 : f32 to vector<8x512xf32>
    %87 = arith.mulf %86, %85 : vector<8x512xf32>
    %88 = math.tanh %87 : vector<8x512xf32>
    %89 = vector.extract_strided_slice %88 {offsets = [0, 0], sizes = [8, 384], strides = [1, 1]} : vector<8x512xf32> to vector<8x384xf32>
    %cst_32 = arith.constant 5.000000e-01 : f32
    %90 = vector.broadcast %cst_32 : f32 to vector<8x384xf32>
    %91 = arith.mulf %90, %89 : vector<8x384xf32>
    %cst_33 = arith.constant 5.000000e-01 : f32
    %92 = vector.broadcast %cst_33 : f32 to vector<8x384xf32>
    %93 = arith.addf %91, %92 : vector<8x384xf32>
    %94 = vector.extract_strided_slice %93 {offsets = [0, 0], sizes = [8, 128], strides = [1, 1]} : vector<8x384xf32> to vector<8x128xf32>
    %95 = vector.extract_strided_slice %93 {offsets = [0, 128], sizes = [8, 128], strides = [1, 1]} : vector<8x384xf32> to vector<8x128xf32>
    %96 = vector.extract_strided_slice %93 {offsets = [0, 256], sizes = [8, 128], strides = [1, 1]} : vector<8x384xf32> to vector<8x128xf32>
    %97 = vector.extract_strided_slice %88 {offsets = [0, 384], sizes = [8, 128], strides = [1, 1]} : vector<8x512xf32> to vector<8x128xf32>
    %98 = arith.mulf %95, %76 : vector<8x128xf32>
    %99 = arith.mulf %94, %97 : vector<8x128xf32>
    %100 = arith.addf %98, %99 : vector<8x128xf32>
    %101 = math.tanh %100 : vector<8x128xf32>
    %102 = arith.mulf %96, %101 : vector<8x128xf32>
    %c3_i32 = arith.constant 3 : i32
    %cst_34 = arith.constant dense<0.000000e+00> : vector<8x512xf32>
    %103 = tpu.matmul %102, %0, %cst_34 {dimension_numbers = #tpu.dot_dimension_numbers<[1], [0], [0], [1], [0, 0, 1, 1], [], []>} : vector<8x128xf32>, vector<128x512xf32>, vector<8x512xf32> -> vector<8x512xf32>
    %c1_i32_35 = arith.constant 1 : i32
    %104 = arith.addi %c3_i32, %c1_i32_35 : i32
    %c8_i32_36 = arith.constant 8 : i32
    %105 = arith.muli %104, %c8_i32_36 : i32
    %106 = tpu.assume_multiple %105, 8 : i32
    %107 = arith.index_cast %106 : i32 to index
    %c0_37 = arith.constant 0 : index
    %108 = vector.load %arg4[%107, %c0_37] : memref<72x512xf32, #tpu.memory_space<vmem>>, vector<8x512xf32>
    %109 = arith.addf %103, %108 : vector<8x512xf32>
    %cst_38 = arith.constant 5.000000e-01 : f32
    %110 = vector.broadcast %cst_38 : f32 to vector<8x512xf32>
    %111 = arith.mulf %110, %109 : vector<8x512xf32>
    %112 = math.tanh %111 : vector<8x512xf32>
    %113 = vector.extract_strided_slice %112 {offsets = [0, 0], sizes = [8, 384], strides = [1, 1]} : vector<8x512xf32> to vector<8x384xf32>
    %cst_39 = arith.constant 5.000000e-01 : f32
    %114 = vector.broadcast %cst_39 : f32 to vector<8x384xf32>
    %115 = arith.mulf %114, %113 : vector<8x384xf32>
    %cst_40 = arith.constant 5.000000e-01 : f32
    %116 = vector.broadcast %cst_40 : f32 to vector<8x384xf32>
    %117 = arith.addf %115, %116 : vector<8x384xf32>
    %118 = vector.extract_strided_slice %117 {offsets = [0, 0], sizes = [8, 128], strides = [1, 1]} : vector<8x384xf32> to vector<8x128xf32>
    %119 = vector.extract_strided_slice %117 {offsets = [0, 128], sizes = [8, 128], strides = [1, 1]} : vector<8x384xf32> to vector<8x128xf32>
    %120 = vector.extract_strided_slice %117 {offsets = [0, 256], sizes = [8, 128], strides = [1, 1]} : vector<8x384xf32> to vector<8x128xf32>
    %121 = vector.extract_strided_slice %112 {offsets = [0, 384], sizes = [8, 128], strides = [1, 1]} : vector<8x512xf32> to vector<8x128xf32>
    %122 = arith.mulf %119, %100 : vector<8x128xf32>
    %123 = arith.mulf %118, %121 : vector<8x128xf32>
    %124 = arith.addf %122, %123 : vector<8x128xf32>
    %125 = math.tanh %124 : vector<8x128xf32>
    %126 = arith.mulf %120, %125 : vector<8x128xf32>
    %c4_i32 = arith.constant 4 : i32
    %cst_41 = arith.constant dense<0.000000e+00> : vector<8x512xf32>
    %127 = tpu.matmul %126, %0, %cst_41 {dimension_numbers = #tpu.dot_dimension_numbers<[1], [0], [0], [1], [0, 0, 1, 1], [], []>} : vector<8x128xf32>, vector<128x512xf32>, vector<8x512xf32> -> vector<8x512xf32>
    %c1_i32_42 = arith.constant 1 : i32
    %128 = arith.addi %c4_i32, %c1_i32_42 : i32
    %c8_i32_43 = arith.constant 8 : i32
    %129 = arith.muli %128, %c8_i32_43 : i32
    %130 = tpu.assume_multiple %129, 8 : i32
    %131 = arith.index_cast %130 : i32 to index
    %c0_44 = arith.constant 0 : index
    %132 = vector.load %arg4[%131, %c0_44] : memref<72x512xf32, #tpu.memory_space<vmem>>, vector<8x512xf32>
    %133 = arith.addf %127, %132 : vector<8x512xf32>
    %cst_45 = arith.constant 5.000000e-01 : f32
    %134 = vector.broadcast %cst_45 : f32 to vector<8x512xf32>
    %135 = arith.mulf %134, %133 : vector<8x512xf32>
    %136 = math.tanh %135 : vector<8x512xf32>
    %137 = vector.extract_strided_slice %136 {offsets = [0, 0], sizes = [8, 384], strides = [1, 1]} : vector<8x512xf32> to vector<8x384xf32>
    %cst_46 = arith.constant 5.000000e-01 : f32
    %138 = vector.broadcast %cst_46 : f32 to vector<8x384xf32>
    %139 = arith.mulf %138, %137 : vector<8x384xf32>
    %cst_47 = arith.constant 5.000000e-01 : f32
    %140 = vector.broadcast %cst_47 : f32 to vector<8x384xf32>
    %141 = arith.addf %139, %140 : vector<8x384xf32>
    %142 = vector.extract_strided_slice %141 {offsets = [0, 0], sizes = [8, 128], strides = [1, 1]} : vector<8x384xf32> to vector<8x128xf32>
    %143 = vector.extract_strided_slice %141 {offsets = [0, 128], sizes = [8, 128], strides = [1, 1]} : vector<8x384xf32> to vector<8x128xf32>
    %144 = vector.extract_strided_slice %141 {offsets = [0, 256], sizes = [8, 128], strides = [1, 1]} : vector<8x384xf32> to vector<8x128xf32>
    %145 = vector.extract_strided_slice %136 {offsets = [0, 384], sizes = [8, 128], strides = [1, 1]} : vector<8x512xf32> to vector<8x128xf32>
    %146 = arith.mulf %143, %124 : vector<8x128xf32>
    %147 = arith.mulf %142, %145 : vector<8x128xf32>
    %148 = arith.addf %146, %147 : vector<8x128xf32>
    %149 = math.tanh %148 : vector<8x128xf32>
    %150 = arith.mulf %144, %149 : vector<8x128xf32>
    %c5_i32 = arith.constant 5 : i32
    %cst_48 = arith.constant dense<0.000000e+00> : vector<8x512xf32>
    %151 = tpu.matmul %150, %0, %cst_48 {dimension_numbers = #tpu.dot_dimension_numbers<[1], [0], [0], [1], [0, 0, 1, 1], [], []>} : vector<8x128xf32>, vector<128x512xf32>, vector<8x512xf32> -> vector<8x512xf32>
    %c1_i32_49 = arith.constant 1 : i32
    %152 = arith.addi %c5_i32, %c1_i32_49 : i32
    %c8_i32_50 = arith.constant 8 : i32
    %153 = arith.muli %152, %c8_i32_50 : i32
    %154 = tpu.assume_multiple %153, 8 : i32
    %155 = arith.index_cast %154 : i32 to index
    %c0_51 = arith.constant 0 : index
    %156 = vector.load %arg4[%155, %c0_51] : memref<72x512xf32, #tpu.memory_space<vmem>>, vector<8x512xf32>
    %157 = arith.addf %151, %156 : vector<8x512xf32>
    %cst_52 = arith.constant 5.000000e-01 : f32
    %158 = vector.broadcast %cst_52 : f32 to vector<8x512xf32>
    %159 = arith.mulf %158, %157 : vector<8x512xf32>
    %160 = math.tanh %159 : vector<8x512xf32>
    %161 = vector.extract_strided_slice %160 {offsets = [0, 0], sizes = [8, 384], strides = [1, 1]} : vector<8x512xf32> to vector<8x384xf32>
    %cst_53 = arith.constant 5.000000e-01 : f32
    %162 = vector.broadcast %cst_53 : f32 to vector<8x384xf32>
    %163 = arith.mulf %162, %161 : vector<8x384xf32>
    %cst_54 = arith.constant 5.000000e-01 : f32
    %164 = vector.broadcast %cst_54 : f32 to vector<8x384xf32>
    %165 = arith.addf %163, %164 : vector<8x384xf32>
    %166 = vector.extract_strided_slice %165 {offsets = [0, 0], sizes = [8, 128], strides = [1, 1]} : vector<8x384xf32> to vector<8x128xf32>
    %167 = vector.extract_strided_slice %165 {offsets = [0, 128], sizes = [8, 128], strides = [1, 1]} : vector<8x384xf32> to vector<8x128xf32>
    %168 = vector.extract_strided_slice %165 {offsets = [0, 256], sizes = [8, 128], strides = [1, 1]} : vector<8x384xf32> to vector<8x128xf32>
    %169 = vector.extract_strided_slice %160 {offsets = [0, 384], sizes = [8, 128], strides = [1, 1]} : vector<8x512xf32> to vector<8x128xf32>
    %170 = arith.mulf %167, %148 : vector<8x128xf32>
    %171 = arith.mulf %166, %169 : vector<8x128xf32>
    %172 = arith.addf %170, %171 : vector<8x128xf32>
    %173 = math.tanh %172 : vector<8x128xf32>
    %174 = arith.mulf %168, %173 : vector<8x128xf32>
    %c6_i32 = arith.constant 6 : i32
    %cst_55 = arith.constant dense<0.000000e+00> : vector<8x512xf32>
    %175 = tpu.matmul %174, %0, %cst_55 {dimension_numbers = #tpu.dot_dimension_numbers<[1], [0], [0], [1], [0, 0, 1, 1], [], []>} : vector<8x128xf32>, vector<128x512xf32>, vector<8x512xf32> -> vector<8x512xf32>
    %c1_i32_56 = arith.constant 1 : i32
    %176 = arith.addi %c6_i32, %c1_i32_56 : i32
    %c8_i32_57 = arith.constant 8 : i32
    %177 = arith.muli %176, %c8_i32_57 : i32
    %178 = tpu.assume_multiple %177, 8 : i32
    %179 = arith.index_cast %178 : i32 to index
    %c0_58 = arith.constant 0 : index
    %180 = vector.load %arg4[%179, %c0_58] : memref<72x512xf32, #tpu.memory_space<vmem>>, vector<8x512xf32>
    %181 = arith.addf %175, %180 : vector<8x512xf32>
    %cst_59 = arith.constant 5.000000e-01 : f32
    %182 = vector.broadcast %cst_59 : f32 to vector<8x512xf32>
    %183 = arith.mulf %182, %181 : vector<8x512xf32>
    %184 = math.tanh %183 : vector<8x512xf32>
    %185 = vector.extract_strided_slice %184 {offsets = [0, 0], sizes = [8, 384], strides = [1, 1]} : vector<8x512xf32> to vector<8x384xf32>
    %cst_60 = arith.constant 5.000000e-01 : f32
    %186 = vector.broadcast %cst_60 : f32 to vector<8x384xf32>
    %187 = arith.mulf %186, %185 : vector<8x384xf32>
    %cst_61 = arith.constant 5.000000e-01 : f32
    %188 = vector.broadcast %cst_61 : f32 to vector<8x384xf32>
    %189 = arith.addf %187, %188 : vector<8x384xf32>
    %190 = vector.extract_strided_slice %189 {offsets = [0, 0], sizes = [8, 128], strides = [1, 1]} : vector<8x384xf32> to vector<8x128xf32>
    %191 = vector.extract_strided_slice %189 {offsets = [0, 128], sizes = [8, 128], strides = [1, 1]} : vector<8x384xf32> to vector<8x128xf32>
    %192 = vector.extract_strided_slice %189 {offsets = [0, 256], sizes = [8, 128], strides = [1, 1]} : vector<8x384xf32> to vector<8x128xf32>
    %193 = vector.extract_strided_slice %184 {offsets = [0, 384], sizes = [8, 128], strides = [1, 1]} : vector<8x512xf32> to vector<8x128xf32>
    %194 = arith.mulf %191, %172 : vector<8x128xf32>
    %195 = arith.mulf %190, %193 : vector<8x128xf32>
    %196 = arith.addf %194, %195 : vector<8x128xf32>
    %197 = math.tanh %196 : vector<8x128xf32>
    %198 = arith.mulf %192, %197 : vector<8x128xf32>
    %c7_i32 = arith.constant 7 : i32
    %cst_62 = arith.constant dense<0.000000e+00> : vector<8x512xf32>
    %199 = tpu.matmul %198, %0, %cst_62 {dimension_numbers = #tpu.dot_dimension_numbers<[1], [0], [0], [1], [0, 0, 1, 1], [], []>} : vector<8x128xf32>, vector<128x512xf32>, vector<8x512xf32> -> vector<8x512xf32>
    %c1_i32_63 = arith.constant 1 : i32
    %200 = arith.addi %c7_i32, %c1_i32_63 : i32
    %c8_i32_64 = arith.constant 8 : i32
    %201 = arith.muli %200, %c8_i32_64 : i32
    %202 = tpu.assume_multiple %201, 8 : i32
    %203 = arith.index_cast %202 : i32 to index
    %c0_65 = arith.constant 0 : index
    %204 = vector.load %arg4[%203, %c0_65] : memref<72x512xf32, #tpu.memory_space<vmem>>, vector<8x512xf32>
    %205 = arith.addf %199, %204 : vector<8x512xf32>
    %cst_66 = arith.constant 5.000000e-01 : f32
    %206 = vector.broadcast %cst_66 : f32 to vector<8x512xf32>
    %207 = arith.mulf %206, %205 : vector<8x512xf32>
    %208 = math.tanh %207 : vector<8x512xf32>
    %209 = vector.extract_strided_slice %208 {offsets = [0, 0], sizes = [8, 384], strides = [1, 1]} : vector<8x512xf32> to vector<8x384xf32>
    %cst_67 = arith.constant 5.000000e-01 : f32
    %210 = vector.broadcast %cst_67 : f32 to vector<8x384xf32>
    %211 = arith.mulf %210, %209 : vector<8x384xf32>
    %cst_68 = arith.constant 5.000000e-01 : f32
    %212 = vector.broadcast %cst_68 : f32 to vector<8x384xf32>
    %213 = arith.addf %211, %212 : vector<8x384xf32>
    %214 = vector.extract_strided_slice %213 {offsets = [0, 0], sizes = [8, 128], strides = [1, 1]} : vector<8x384xf32> to vector<8x128xf32>
    %215 = vector.extract_strided_slice %213 {offsets = [0, 128], sizes = [8, 128], strides = [1, 1]} : vector<8x384xf32> to vector<8x128xf32>
    %216 = vector.extract_strided_slice %213 {offsets = [0, 256], sizes = [8, 128], strides = [1, 1]} : vector<8x384xf32> to vector<8x128xf32>
    %217 = vector.extract_strided_slice %208 {offsets = [0, 384], sizes = [8, 128], strides = [1, 1]} : vector<8x512xf32> to vector<8x128xf32>
    %218 = arith.mulf %215, %196 : vector<8x128xf32>
    %219 = arith.mulf %214, %217 : vector<8x128xf32>
    %220 = arith.addf %218, %219 : vector<8x128xf32>
    %221 = math.tanh %220 : vector<8x128xf32>
    %222 = arith.mulf %216, %221 : vector<8x128xf32>
    %c8_i32_69 = arith.constant 8 : i32
    %c0_70 = arith.constant 0 : index
    %c0_71 = arith.constant 0 : index
    %223 = vector.load %arg2[%c0_70, %c0_71] : memref<136x128xf32, #tpu.memory_space<vmem>>, vector<128x128xf32>
    %cst_72 = arith.constant dense<0.000000e+00> : vector<8x128xf32>
    %224 = tpu.matmul %222, %223, %cst_72 {dimension_numbers = #tpu.dot_dimension_numbers<[1], [0], [0], [1], [0, 0, 1, 1], [], []>} : vector<8x128xf32>, vector<128x128xf32>, vector<8x128xf32> -> vector<8x128xf32>
    %c128_73 = arith.constant 128 : index
    %c0_74 = arith.constant 0 : index
    %225 = vector.load %arg2[%c128_73, %c0_74] : memref<136x128xf32, #tpu.memory_space<vmem>>, vector<1x128xf32>
    %226 = vector.broadcast %225 : vector<1x128xf32> to vector<8x128xf32>
    %227 = arith.addf %224, %226 : vector<8x128xf32>
    %c0_75 = arith.constant 0 : index
    %c0_76 = arith.constant 0 : index
    %228 = vector.load %arg3[%c0_75, %c0_76] : memref<8x128xf32, #tpu.memory_space<vmem>>, vector<8x128xf32>
    tpu.vector_store %arg3[%c0_75, %c0_76], %227 {strides = array<i32>} : memref<8x128xf32, #tpu.memory_space<vmem>>, vector<8x128xf32>,
    return
  }
}

</mosaic_0001>

<llo_original>
// kernel: tpu_custom_call.1
$region0: #{tpu_custom_call.1}
  #allocation0 [shape = 'u32[]', space=smem, size = 0x4, offset = 0x4, fixed_abs, tag = 'smem constant byte address 0x4 - core index']
  #allocation1 [shape = 'u32[144,128]{1,0:T(1,128)}', space=vmem, size = 0x12000, scoped, tag = 'internal scratch']
  #allocation2 [shape = 'f32[72,512]{1,0:T(8,128)}', space=vmem, size = 0x24000, scoped, tag = 'scratch operand']
  %s0 = inlined_call_operand.vmem [shape: f32[72,1], index: 0, kind: input, shape index: {}]
  %s1 = inlined_call_operand.hbm [shape: f32[144,512], index: 1, kind: input, shape index: {}]
  %s2 = inlined_call_operand.hbm [shape: f32[136,128], index: 2, kind: input, shape index: {}]
  %s3 = inlined_call_operand.hbm [shape: f32[8,128], index: 3, kind: output, shape index: {}]
  %s4 = sld [smem:[#allocation0]]
  $region30: #{tpu_custom_call.1} parent=0
    _
  %s6 = ssub.s32 1, %s4
  %s7 = scalar_select 0, %s6, %s4
  $region1: #{tpu_custom_call.1} parent=0
    #allocation3 [shape = 'u8[294912]{0}', space=vmem, size = 0x48000, scoped, tag = 'input window, operand 1, single buffered']
    #allocation4 [shape = 's32[1]{0}', space=sflag, size = 0x4, scoped, tag = 'scoped memory for tpu_custom_call.1']
    #allocation5 [shape = 's32[1]{0}', space=sflag, size = 0x4, scoped, tag = 'scoped memory for tpu_custom_call.1']
    #allocation6 [shape = 'u8[69632]{0}', space=vmem, size = 0x11000, scoped, tag = 'input window, operand 2, single buffered']
    #allocation7 [shape = 's32[1]{0}', space=sflag, size = 0x4, scoped, tag = 'scoped memory for tpu_custom_call.1']
    #allocation8 [shape = 'u8[4096]{0}', space=vmem, size = 0x1000, scoped, tag = 'output window, operand 0, single buffered']
    %8 = vsyncpa [#allocation4], 0
    %9 = vsyncpa [#allocation7], 0
    %10 = vsyncpa [#allocation5], 0
    // Predicated region
    $region2: #{tpu_custom_call.1} parent=1 // pred_check
      _
    $region3: #{tpu_custom_call.1} parent=1 // pred_check_branch
      %12 = sbr.rel (0) target = $region5
    $region4: #{tpu_custom_call.1} parent=1 // pred_region
      _
    $region5: #{tpu_custom_call.1} parent=1 // pred_fallthru
      _
    // Predicated region
    $region6: #{tpu_custom_call.1} parent=1 // pred_check
      _
    $region7: #{tpu_custom_call.1} parent=1 // pred_check_branch
      %14 = sbr.rel (0) target = $region9
    $region8: #{tpu_custom_call.1} parent=1 // pred_region
      %s16 = ssub.s32 9216, 9216
      %17 = vsyncadd [#allocation4], %s16
      %s18 = sshll.u32 [#allocation3], 4
      %s19 = int_to_ptr.vmem [resolvable:$true] %s18
      %24 = dma.hbm_to_vmem [thread:$0]  %s1, 9216, %s19, [#allocation4], 512, 512, 32
    $region9: #{tpu_custom_call.1} parent=1 // pred_fallthru
      _
    // Predicated region
    $region10: #{tpu_custom_call.1} parent=1 // pred_check
      _
    $region11: #{tpu_custom_call.1} parent=1 // pred_check_branch
      %26 = sbr.rel (0) target = $region13
    $region12: #{tpu_custom_call.1} parent=1 // pred_region
      %s28 = ssub.s32 2176, 2176
      %29 = vsyncadd [#allocation7], %s28
      %s30 = sshll.u32 [#allocation6], 4
      %s31 = int_to_ptr.vmem [resolvable:$true] %s30
      %36 = dma.hbm_to_vmem [thread:$0]  %s2, 2176, %s31, [#allocation7], 128, 128, 8
    $region13: #{tpu_custom_call.1} parent=1 // pred_fallthru
      _
    // Predicated region
    $region14: #{tpu_custom_call.1} parent=1 // pred_check
      _
    $region15: #{tpu_custom_call.1} parent=1 // pred_check_branch
      %38 = sbr.rel (0) target = $region17
    $region16: #{tpu_custom_call.1} parent=1 // pred_region
      %39 = dma.done [#allocation4], 9216
    $region17: #{tpu_custom_call.1} parent=1 // pred_fallthru
      _
    // Predicated region
    $region18: #{tpu_custom_call.1} parent=1 // pred_check
      _
    $region19: #{tpu_custom_call.1} parent=1 // pred_check_branch
      %41 = sbr.rel (0) target = $region21
    $region20: #{tpu_custom_call.1} parent=1 // pred_region
      %42 = dma.done [#allocation7], 2176
    $region21: #{tpu_custom_call.1} parent=1 // pred_fallthru
      _
    %v43 = vld [vmem:[#allocation3] sm:$0xff]
    %v44 = vld [vmem:[#allocation3 + $0x8] sm:$0xff]
    %v45 = vld [vmem:[#allocation3 + $0x10] sm:$0xff]
    %v46 = vld [vmem:[#allocation3 + $0x18] sm:$0xff]
    %v47 = vld [vmem:[#allocation3 + $0x20] sm:$0xff]
    %v48 = vld [vmem:[#allocation3 + $0x28] sm:$0xff]
    %v49 = vld [vmem:[#allocation3 + $0x30] sm:$0xff]
    %v50 = vld [vmem:[#allocation3 + $0x38] sm:$0xff]
    %v51 = vld [vmem:[#allocation3 + $0x40] sm:$0xff]
    %v52 = vld [vmem:[#allocation3 + $0x48] sm:$0xff]
    %v53 = vld [vmem:[#allocation3 + $0x50] sm:$0xff]
    %v54 = vld [vmem:[#allocation3 + $0x58] sm:$0xff]
    %v55 = vld [vmem:[#allocation3 + $0x60] sm:$0xff]
    %v56 = vld [vmem:[#allocation3 + $0x68] sm:$0xff]
    %v57 = vld [vmem:[#allocation3 + $0x70] sm:$0xff]
    %v58 = vld [vmem:[#allocation3 + $0x78] sm:$0xff]
    %v59 = vld [vmem:[#allocation3 + $0x80] sm:$0xff]
    %v60 = vld [vmem:[#allocation3 + $0x88] sm:$0xff]
    %v61 = vld [vmem:[#allocation3 + $0x90] sm:$0xff]
    %v62 = vld [vmem:[#allocation3 + $0x98] sm:$0xff]
    %v63 = vld [vmem:[#allocation3 + $0xa0] sm:$0xff]
    %v64 = vld [vmem:[#allocation3 + $0xa8] sm:$0xff]
    %v65 = vld [vmem:[#allocation3 + $0xb0] sm:$0xff]
    %v66 = vld [vmem:[#allocation3 + $0xb8] sm:$0xff]
    %v67 = vld [vmem:[#allocation3 + $0xc0] sm:$0xff]
    %v68 = vld [vmem:[#allocation3 + $0xc8] sm:$0xff]
    %v69 = vld [vmem:[#allocation3 + $0xd0] sm:$0xff]
    %v70 = vld [vmem:[#allocation3 + $0xd8] sm:$0xff]
    %v71 = vld [vmem:[#allocation3 + $0xe0] sm:$0xff]
    %v72 = vld [vmem:[#allocation3 + $0xe8] sm:$0xff]
    %v73 = vld [vmem:[#allocation3 + $0xf0] sm:$0xff]
    %v74 = vld [vmem:[#allocation3 + $0xf8] sm:$0xff]
    %v75 = vld [vmem:[#allocation3 + $0x100] sm:$0xff]
    %v76 = vld [vmem:[#allocation3 + $0x108] sm:$0xff]
    %v77 = vld [vmem:[#allocation3 + $0x110] sm:$0xff]
    %v78 = vld [vmem:[#allocation3 + $0x118] sm:$0xff]
    %v79 = vld [vmem:[#allocation3 + $0x120] sm:$0xff]
    %v80 = vld [vmem:[#allocation3 + $0x128] sm:$0xff]
    %v81 = vld [vmem:[#allocation3 + $0x130] sm:$0xff]
    %v82 = vld [vmem:[#allocation3 + $0x138] sm:$0xff]
    %v83 = vld [vmem:[#allocation3 + $0x140] sm:$0xff]
    %v84 = vld [vmem:[#allocation3 + $0x148] sm:$0xff]
    %v85 = vld [vmem:[#allocation3 + $0x150] sm:$0xff]
    %v86 = vld [vmem:[#allocation3 + $0x158] sm:$0xff]
    %v87 = vld [vmem:[#allocation3 + $0x160] sm:$0xff]
    %v88 = vld [vmem:[#allocation3 + $0x168] sm:$0xff]
    %v89 = vld [vmem:[#allocation3 + $0x170] sm:$0xff]
    %v90 = vld [vmem:[#allocation3 + $0x178] sm:$0xff]
    %v91 = vld [vmem:[#allocation3 + $0x180] sm:$0xff]
    %v92 = vld [vmem:[#allocation3 + $0x188] sm:$0xff]
    %v93 = vld [vmem:[#allocation3 + $0x190] sm:$0xff]
    %v94 = vld [vmem:[#allocation3 + $0x198] sm:$0xff]
    %v95 = vld [vmem:[#allocation3 + $0x1a0] sm:$0xff]
    %v96 = vld [vmem:[#allocation3 + $0x1a8] sm:$0xff]
    %v97 = vld [vmem:[#allocation3 + $0x1b0] sm:$0xff]
    %v98 = vld [vmem:[#allocation3 + $0x1b8] sm:$0xff]
    %v99 = vld [vmem:[#allocation3 + $0x1c0] sm:$0xff]
    %v100 = vld [vmem:[#allocation3 + $0x1c8] sm:$0xff]
    %v101 = vld [vmem:[#allocation3 + $0x1d0] sm:$0xff]
    %v102 = vld [vmem:[#allocation3 + $0x1d8] sm:$0xff]
    %v103 = vld [vmem:[#allocation3 + $0x1e0] sm:$0xff]
    %v104 = vld [vmem:[#allocation3 + $0x1e8] sm:$0xff]
    %v105 = vld [vmem:[#allocation3 + $0x1f0] sm:$0xff]
    %v106 = vld [vmem:[#allocation3 + $0x1f8] sm:$0xff]
    %s107 = scalar_lea.vmem [#allocation3], 512
    %v108 = vld [vmem:[%s107] ss:$8 sm:$0xf]
    %s109 = scalar_lea.vmem [#allocation3], 544
    %v110 = vld [vmem:[%s109] ss:$8 sm:$0xf]
    %v111 = vld [vmem:[%s0] sm:$0xff]
    %v112 = vld [vmem:[%s0 + $0x8] sm:$0xff]
    %v113 = vld [vmem:[%s0 + $0x10] sm:$0xff]
    %v114 = vld [vmem:[%s0 + $0x18] sm:$0xff]
    %v115 = vld [vmem:[%s0 + $0x20] sm:$0xff]
    %v116 = vld [vmem:[%s0 + $0x28] sm:$0xff]
    %v117 = vld [vmem:[%s0 + $0x30] sm:$0xff]
    %v118 = vld [vmem:[%s0 + $0x38] sm:$0xff]
    %v119 = vld [vmem:[%s0 + $0x40] sm:$0xff]
    %121 = vset.pattern.permute.xlu0 0
    %122 = vperm.xlu0 %121, %v111
    %v123 = vpop.permute.xlu0 %122
    %126 = vset.pattern.permute.xlu0 0
    %127 = vperm.xlu0 %126, %v112
    %v128 = vpop.permute.xlu0 %127
    %131 = vset.pattern.permute.xlu0 0
    %132 = vperm.xlu0 %131, %v113
    %v133 = vpop.permute.xlu0 %132
    %136 = vset.pattern.permute.xlu0 0
    %137 = vperm.xlu0 %136, %v114
    %v138 = vpop.permute.xlu0 %137
    %141 = vset.pattern.permute.xlu0 0
    %142 = vperm.xlu0 %141, %v115
    %v143 = vpop.permute.xlu0 %142
    %146 = vset.pattern.permute.xlu0 0
    %147 = vperm.xlu0 %146, %v116
    %v148 = vpop.permute.xlu0 %147
    %151 = vset.pattern.permute.xlu0 0
    %152 = vperm.xlu0 %151, %v117
    %v153 = vpop.permute.xlu0 %152
    %156 = vset.pattern.permute.xlu0 0
    %157 = vperm.xlu0 %156, %v118
    %v158 = vpop.permute.xlu0 %157
    %161 = vset.pattern.permute.xlu0 0
    %162 = vperm.xlu0 %161, %v119
    %v163 = vpop.permute.xlu0 %162
    %v166 = vlaneseq
    %v167 = vshrl.u32 %v166, 7
    %v168 = vsub.s32 0, %v167
    %v169 = vrot.slane %v108, %v168
    %v170 = vlaneseq
    %v171 = vshrl.u32 %v170, 7
    %v172 = vsub.s32 1, %v171
    %v173 = vrot.slane %v108, %v172
    %v174 = vlaneseq
    %v175 = vshrl.u32 %v174, 7
    %v176 = vsub.s32 2, %v175
    %v177 = vrot.slane %v108, %v176
    %v178 = vlaneseq
    %v179 = vshrl.u32 %v178, 7
    %v180 = vsub.s32 3, %v179
    %v181 = vrot.slane %v108, %v180
    %v186 = vmul.f32 %v123, %v169
    %v187 = vmul.f32 %v123, %v173
    %v188 = vmul.f32 %v123, %v177
    %v189 = vmul.f32 %v123, %v181
    %v190 = vmul.f32 %v128, %v169
    %v191 = vmul.f32 %v128, %v173
    %v192 = vmul.f32 %v128, %v177
    %v193 = vmul.f32 %v128, %v181
    %v194 = vmul.f32 %v133, %v169
    %v195 = vmul.f32 %v133, %v173
    %v196 = vmul.f32 %v133, %v177
    %v197 = vmul.f32 %v133, %v181
    %v198 = vmul.f32 %v138, %v169
    %v199 = vmul.f32 %v138, %v173
    %v200 = vmul.f32 %v138, %v177
    %v201 = vmul.f32 %v138, %v181
    %v202 = vmul.f32 %v143, %v169
    %v203 = vmul.f32 %v143, %v173
    %v204 = vmul.f32 %v143, %v177
    %v205 = vmul.f32 %v143, %v181
    %v206 = vmul.f32 %v148, %v169
    %v207 = vmul.f32 %v148, %v173
    %v208 = vmul.f32 %v148, %v177
    %v209 = vmul.f32 %v148, %v181
    %v210 = vmul.f32 %v153, %v169
    %v211 = vmul.f32 %v153, %v173
    %v212 = vmul.f32 %v153, %v177
    %v213 = vmul.f32 %v153, %v181
    %v214 = vmul.f32 %v158, %v169
    %v215 = vmul.f32 %v158, %v173
    %v216 = vmul.f32 %v158, %v177
    %v217 = vmul.f32 %v158, %v181
    %v218 = vmul.f32 %v163, %v169
    %v219 = vmul.f32 %v163, %v173
    %v220 = vmul.f32 %v163, %v177
    %v221 = vmul.f32 %v163, %v181
    %v223 = vlaneseq
    %v224 = vshrl.u32 %v223, 7
    %v225 = vsub.s32 0, %v224
    %v226 = vrot.slane %v110, %v225
    %v227 = vlaneseq
    %v228 = vshrl.u32 %v227, 7
    %v229 = vsub.s32 1, %v228
    %v230 = vrot.slane %v110, %v229
    %v231 = vlaneseq
    %v232 = vshrl.u32 %v231, 7
    %v233 = vsub.s32 2, %v232
    %v234 = vrot.slane %v110, %v233
    %v235 = vlaneseq
    %v236 = vshrl.u32 %v235, 7
    %v237 = vsub.s32 3, %v236
    %v238 = vrot.slane %v110, %v237
    %v243 = vadd.f32 %v186, %v226
    %v244 = vadd.f32 %v187, %v230
    %v245 = vadd.f32 %v188, %v234
    %v246 = vadd.f32 %v189, %v238
    %v247 = vadd.f32 %v190, %v226
    %v248 = vadd.f32 %v191, %v230
    %v249 = vadd.f32 %v192, %v234
    %v250 = vadd.f32 %v193, %v238
    %v251 = vadd.f32 %v194, %v226
    %v252 = vadd.f32 %v195, %v230
    %v253 = vadd.f32 %v196, %v234
    %v254 = vadd.f32 %v197, %v238
    %v255 = vadd.f32 %v198, %v226
    %v256 = vadd.f32 %v199, %v230
    %v257 = vadd.f32 %v200, %v234
    %v258 = vadd.f32 %v201, %v238
    %v259 = vadd.f32 %v202, %v226
    %v260 = vadd.f32 %v203, %v230
    %v261 = vadd.f32 %v204, %v234
    %v262 = vadd.f32 %v205, %v238
    %v263 = vadd.f32 %v206, %v226
    %v264 = vadd.f32 %v207, %v230
    %v265 = vadd.f32 %v208, %v234
    %v266 = vadd.f32 %v209, %v238
    %v267 = vadd.f32 %v210, %v226
    %v268 = vadd.f32 %v211, %v230
    %v269 = vadd.f32 %v212, %v234
    %v270 = vadd.f32 %v213, %v238
    %v271 = vadd.f32 %v214, %v226
    %v272 = vadd.f32 %v215, %v230
    %v273 = vadd.f32 %v216, %v234
    %v274 = vadd.f32 %v217, %v238
    %v275 = vadd.f32 %v218, %v226
    %v276 = vadd.f32 %v219, %v230
    %v277 = vadd.f32 %v220, %v234
    %v278 = vadd.f32 %v221, %v238
    %279 = vst [vmem:[#allocation2] sm:$0xff] %v243
    %280 = vst [vmem:[#allocation2 + $0x8] sm:$0xff] %v244
    %281 = vst [vmem:[#allocation2 + $0x10] sm:$0xff] %v245
    %282 = vst [vmem:[#allocation2 + $0x18] sm:$0xff] %v246
    %283 = vst [vmem:[#allocation2 + $0x20] sm:$0xff] %v247
    %284 = vst [vmem:[#allocation2 + $0x28] sm:$0xff] %v248
    %285 = vst [vmem:[#allocation2 + $0x30] sm:$0xff] %v249
    %286 = vst [vmem:[#allocation2 + $0x38] sm:$0xff] %v250
    %287 = vst [vmem:[#allocation2 + $0x40] sm:$0xff] %v251
    %288 = vst [vmem:[#allocation2 + $0x48] sm:$0xff] %v252
    %289 = vst [vmem:[#allocation2 + $0x50] sm:$0xff] %v253
    %290 = vst [vmem:[#allocation2 + $0x58] sm:$0xff] %v254
    %291 = vst [vmem:[#allocation2 + $0x60] sm:$0xff] %v255
    %292 = vst [vmem:[#allocation2 + $0x68] sm:$0xff] %v256
    %293 = vst [vmem:[#allocation2 + $0x70] sm:$0xff] %v257
    %294 = vst [vmem:[#allocation2 + $0x78] sm:$0xff] %v258
    %295 = vst [vmem:[#allocation2 + $0x80] sm:$0xff] %v259
    %296 = vst [vmem:[#allocation2 + $0x88] sm:$0xff] %v260
    %297 = vst [vmem:[#allocation2 + $0x90] sm:$0xff] %v261
    %298 = vst [vmem:[#allocation2 + $0x98] sm:$0xff] %v262
    %299 = vst [vmem:[#allocation2 + $0xa0] sm:$0xff] %v263
    %300 = vst [vmem:[#allocation2 + $0xa8] sm:$0xff] %v264
    %301 = vst [vmem:[#allocation2 + $0xb0] sm:$0xff] %v265
    %302 = vst [vmem:[#allocation2 + $0xb8] sm:$0xff] %v266
    %303 = vst [vmem:[#allocation2 + $0xc0] sm:$0xff] %v267
    %304 = vst [vmem:[#allocation2 + $0xc8] sm:$0xff] %v268
    %305 = vst [vmem:[#allocation2 + $0xd0] sm:$0xff] %v269
    %306 = vst [vmem:[#allocation2 + $0xd8] sm:$0xff] %v270
    %307 = vst [vmem:[#allocation2 + $0xe0] sm:$0xff] %v271
    %308 = vst [vmem:[#allocation2 + $0xe8] sm:$0xff] %v272
    %309 = vst [vmem:[#allocation2 + $0xf0] sm:$0xff] %v273
    %310 = vst [vmem:[#allocation2 + $0xf8] sm:$0xff] %v274
    %311 = vst [vmem:[#allocation2 + $0x100] sm:$0xff] %v275
    %312 = vst [vmem:[#allocation2 + $0x108] sm:$0xff] %v276
    %313 = vst [vmem:[#allocation2 + $0x110] sm:$0xff] %v277
    %314 = vst [vmem:[#allocation2 + $0x118] sm:$0xff] %v278
    %v315 = vld [vmem:[#allocation2] sm:$0xff]
    %v316 = vld [vmem:[#allocation2 + $0x10] sm:$0xff]
    %v317 = vld [vmem:[#allocation2 + $0x18] sm:$0xff]
    %v318 = vmul.f32 %v315, 0.5
    %v319 = vmul.f32 %v316, 0.5
    %v320 = vmul.f32 %v317, 0.5
    %v321 = vtanh.pop %v318
    %v322 = vtanh.pop %v319
    %v323 = vtanh.pop %v320
    %v324 = vmul.f32 %v321, 0.5
    %v325 = vadd.f32 %v324, 0.5
    %v326 = vmul.f32 %v322, 0.5
    %v327 = vadd.f32 %v326, 0.5
    %v328 = vmul.f32 %v325, %v323
    %v329 = vtanh.pop %v328
    %v330 = vmul.f32 %v327, %v329
    %vm331 = vcmask 523264
    %v332 = vsel %vm331, %v330, 0.0
    %v333 = vsel %vm331, %v328, 0.0
    %s334 = smul.u32 1, 4
    %s335 = smul.addr %s334, 8
    %s336 = scalar_lea.vmem [#allocation2], %s335
    %v337 = vld [vmem:[%s336] sm:$0xff]
    %v338 = vld [vmem:[%s336 + $0x8] sm:$0xff]
    %v339 = vld [vmem:[%s336 + $0x10] sm:$0xff]
    %v340 = vld [vmem:[%s336 + $0x18] sm:$0xff]
    %341 = vmatprep.subr.mxu0 %v104
    %342 = vmatpush1.msra.mxu0 %v103
    %343 = vmatprep.subr.mxu0 %v100
    %344 = vmatpush1.msra.mxu0 %v99
    %345 = vmatprep.subr.mxu0 %v96
    %346 = vmatpush1.msra.mxu0 %v95
    %347 = vmatprep.subr.mxu0 %v92
    %348 = vmatpush1.msra.mxu0 %v91
    %349 = vmatprep.subr.mxu0 %v88
    %350 = vmatpush1.msra.mxu0 %v87
    %351 = vmatprep.subr.mxu0 %v84
    %352 = vmatpush1.msra.mxu0 %v83
    %353 = vmatprep.subr.mxu0 %v80
    %354 = vmatpush1.msra.mxu0 %v79
    %355 = vmatprep.subr.mxu0 %v76
    %356 = vmatpush1.msra.mxu0 %v75
    %357 = vmatprep.subr.mxu0 %v72
    %358 = vmatpush1.msra.mxu0 %v71
    %359 = vmatprep.subr.mxu0 %v68
    %360 = vmatpush1.msra.mxu0 %v67
    %361 = vmatprep.subr.mxu0 %v64
    %362 = vmatpush1.msra.mxu0 %v63
    %363 = vmatprep.subr.mxu0 %v60
    %364 = vmatpush1.msra.mxu0 %v59
    %365 = vmatprep.subr.mxu0 %v56
    %366 = vmatpush1.msra.mxu0 %v55
    %367 = vmatprep.subr.mxu0 %v52
    %368 = vmatpush1.msra.mxu0 %v51
    %369 = vmatprep.subr.mxu0 %v48
    %370 = vmatpush1.msra.mxu0 %v47
    %371 = vmatprep.subr.mxu0 %v44
    %372 = vmatpush1.msra.mxu0 %v43
    %373 = vmatprep.subr.mxu0 0.0
    %374 = vmatpush2.msra.mxu0 0.0
    %375 = vmatprep.subr.mxu0 0.0
    %376 = vmatpush2.msra.mxu0 0.0
    %377 = vmatprep.subr.mxu0 0.0
    %378 = vmatpush2.msra.mxu0 0.0
    %379 = vmatprep.subr.mxu0 0.0
    %380 = vmatpush2.msra.mxu0 0.0
    %381 = vmatprep.subr.mxu0 0.0
    %382 = vmatpush2.msra.mxu0 0.0
    %383 = vmatprep.subr.mxu0 0.0
    %384 = vmatpush2.msra.mxu0 0.0
    %385 = vmatprep.subr.mxu0 0.0
    %386 = vmatpush2.msra.mxu0 0.0
    %387 = vmatprep.subr.mxu0 0.0
    %388 = vmatpush2.msra.mxu0 0.0
    %389 = vmatprep.subr.mxu0 0.0
    %390 = vmatpush2.msra.mxu0 0.0
    %391 = vmatprep.subr.mxu0 0.0
    %392 = vmatpush2.msra.mxu0 0.0
    %393 = vmatprep.subr.mxu0 0.0
    %394 = vmatpush2.msra.mxu0 0.0
    %395 = vmatprep.subr.mxu0 0.0
    %396 = vmatpush2.msra.mxu0 0.0
    %397 = vmatprep.subr.mxu0 0.0
    %398 = vmatpush2.msra.mxu0 0.0
    %399 = vmatprep.subr.mxu0 0.0
    %400 = vmatpush2.msra.mxu0 0.0
    %401 = vmatprep.subr.mxu0 0.0
    %402 = vmatpush2.msra.mxu0 0.0
    %403 = vmatprep.subr.mxu0 0.0
    %404 = vmatpush2.msra.mxu0 0.0
    %405 = vmatprep.mubr.f32.mxu0 0.0
    %406 = vmatmul.mubr.f32.gmra.mxu0 %v332
    %v407 = vpop.f32.mrf.mxu0
    %v408 = vadd.f32 %v337, %v407
    %v409 = vpop.f32.mrf.mxu0
    %v410 = vadd.f32 %v338, %v409
    %411 = vdwg.mxu0
    %412 = vmatprep.subr.mxu0 %v106
    %413 = vmatpush1.msra.mxu0 %v105
    %414 = vmatprep.subr.mxu0 %v102
    %415 = vmatpush1.msra.mxu0 %v101
    %416 = vmatprep.subr.mxu0 %v98
    %417 = vmatpush1.msra.mxu0 %v97
    %418 = vmatprep.subr.mxu0 %v94
    %419 = vmatpush1.msra.mxu0 %v93
    %420 = vmatprep.subr.mxu0 %v90
    %421 = vmatpush1.msra.mxu0 %v89
    %422 = vmatprep.subr.mxu0 %v86
    %423 = vmatpush1.msra.mxu0 %v85
    %424 = vmatprep.subr.mxu0 %v82
    %425 = vmatpush1.msra.mxu0 %v81
    %426 = vmatprep.subr.mxu0 %v78
    %427 = vmatpush1.msra.mxu0 %v77
    %428 = vmatprep.subr.mxu0 %v74
    %429 = vmatpush1.msra.mxu0 %v73
    %430 = vmatprep.subr.mxu0 %v70
    %431 = vmatpush1.msra.mxu0 %v69
    %432 = vmatprep.subr.mxu0 %v66
    %433 = vmatpush1.msra.mxu0 %v65
    %434 = vmatprep.subr.mxu0 %v62
    %435 = vmatpush1.msra.mxu0 %v61
    %436 = vmatprep.subr.mxu0 %v58
    %437 = vmatpush1.msra.mxu0 %v57
    %438 = vmatprep.subr.mxu0 %v54
    %439 = vmatpush1.msra.mxu0 %v53
    %440 = vmatprep.subr.mxu0 %v50
    %441 = vmatpush1.msra.mxu0 %v49
    %442 = vmatprep.subr.mxu0 %v46
    %443 = vmatpush1.msra.mxu0 %v45
    %444 = vmatprep.subr.mxu0 0.0
    %445 = vmatpush2.msra.mxu0 0.0
    %446 = vmatprep.subr.mxu0 0.0
    %447 = vmatpush2.msra.mxu0 0.0
    %448 = vmatprep.subr.mxu0 0.0
    %449 = vmatpush2.msra.mxu0 0.0
    %450 = vmatprep.subr.mxu0 0.0
    %451 = vmatpush2.msra.mxu0 0.0
    %452 = vmatprep.subr.mxu0 0.0
    %453 = vmatpush2.msra.mxu0 0.0
    %454 = vmatprep.subr.mxu0 0.0
    %455 = vmatpush2.msra.mxu0 0.0
    %456 = vmatprep.subr.mxu0 0.0
    %457 = vmatpush2.msra.mxu0 0.0
    %458 = vmatprep.subr.mxu0 0.0
    %459 = vmatpush2.msra.mxu0 0.0
    %460 = vmatprep.subr.mxu0 0.0
    %461 = vmatpush2.msra.mxu0 0.0
    %462 = vmatprep.subr.mxu0 0.0
    %463 = vmatpush2.msra.mxu0 0.0
    %464 = vmatprep.subr.mxu0 0.0
    %465 = vmatpush2.msra.mxu0 0.0
    %466 = vmatprep.subr.mxu0 0.0
    %467 = vmatpush2.msra.mxu0 0.0
    %468 = vmatprep.subr.mxu0 0.0
    %469 = vmatpush2.msra.mxu0 0.0
    %470 = vmatprep.subr.mxu0 0.0
    %471 = vmatpush2.msra.mxu0 0.0
    %472 = vmatprep.subr.mxu0 0.0
    %473 = vmatpush2.msra.mxu0 0.0
    %474 = vmatprep.subr.mxu0 0.0
    %475 = vmatpush2.msra.mxu0 0.0
    %476 = vmatprep.mubr.f32.mxu0 0.0
    %477 = vmatmul.mubr.f32.gmra.mxu0 %v332
    %v478 = vpop.f32.mrf.mxu0
    %v479 = vadd.f32 %v339, %v478
    %v480 = vpop.f32.mrf.mxu0
    %v481 = vadd.f32 %v340, %v480
    %482 = vdwg.mxu0
    %v483 = vmul.f32 %v408, 0.5
    %v484 = vmul.f32 %v410, 0.5
    %v485 = vmul.f32 %v479, 0.5
    %v486 = vmul.f32 %v481, 0.5
    %v487 = vtanh.pop %v483
    %v488 = vtanh.pop %v484
    %v489 = vtanh.pop %v485
    %v490 = vtanh.pop %v486
    %v491 = vmul.f32 %v487, 0.5
    %v492 = vmul.f32 %v488, 0.5
    %v493 = vmul.f32 %v489, 0.5
    %v494 = vadd.f32 %v491, 0.5
    %v495 = vadd.f32 %v492, 0.5
    %v496 = vadd.f32 %v493, 0.5
    %v497 = vmul.f32 %v495, %v333
    %v498 = vmul.f32 %v494, %v490
    %v499 = vadd.f32 %v497, %v498
    %v500 = vtanh.pop %v499
    %v501 = vmul.f32 %v496, %v500
    %s502 = smul.u32 2, 4
    %s503 = smul.addr %s502, 8
    %s504 = scalar_lea.vmem [#allocation2], %s503
    %v505 = vld [vmem:[%s504] sm:$0xff]
    %v506 = vld [vmem:[%s504 + $0x8] sm:$0xff]
    %v507 = vld [vmem:[%s504 + $0x10] sm:$0xff]
    %v508 = vld [vmem:[%s504 + $0x18] sm:$0xff]
    %509 = vmatprep.subr.mxu0 %v104
    %510 = vmatpush1.msra.mxu0 %v103
    %511 = vmatprep.subr.mxu0 %v100
    %512 = vmatpush1.msra.mxu0 %v99
    %513 = vmatprep.subr.mxu0 %v96
    %514 = vmatpush1.msra.mxu0 %v95
    %515 = vmatprep.subr.mxu0 %v92
    %516 = vmatpush1.msra.mxu0 %v91
    %517 = vmatprep.subr.mxu0 %v88
    %518 = vmatpush1.msra.mxu0 %v87
    %519 = vmatprep.subr.mxu0 %v84
    %520 = vmatpush1.msra.mxu0 %v83
    %521 = vmatprep.subr.mxu0 %v80
    %522 = vmatpush1.msra.mxu0 %v79
    %523 = vmatprep.subr.mxu0 %v76
    %524 = vmatpush1.msra.mxu0 %v75
    %525 = vmatprep.subr.mxu0 %v72
    %526 = vmatpush1.msra.mxu0 %v71
    %527 = vmatprep.subr.mxu0 %v68
    %528 = vmatpush1.msra.mxu0 %v67
    %529 = vmatprep.subr.mxu0 %v64
    %530 = vmatpush1.msra.mxu0 %v63
    %531 = vmatprep.subr.mxu0 %v60
    %532 = vmatpush1.msra.mxu0 %v59
    %533 = vmatprep.subr.mxu0 %v56
    %534 = vmatpush1.msra.mxu0 %v55
    %535 = vmatprep.subr.mxu0 %v52
    %536 = vmatpush1.msra.mxu0 %v51
    %537 = vmatprep.subr.mxu0 %v48
    %538 = vmatpush1.msra.mxu0 %v47
    %539 = vmatprep.subr.mxu0 %v44
    %540 = vmatpush1.msra.mxu0 %v43
    %541 = vmatprep.subr.mxu0 0.0
    %542 = vmatpush2.msra.mxu0 0.0
    %543 = vmatprep.subr.mxu0 0.0
    %544 = vmatpush2.msra.mxu0 0.0
    %545 = vmatprep.subr.mxu0 0.0
    %546 = vmatpush2.msra.mxu0 0.0
    %547 = vmatprep.subr.mxu0 0.0
    %548 = vmatpush2.msra.mxu0 0.0
    %549 = vmatprep.subr.mxu0 0.0
    %550 = vmatpush2.msra.mxu0 0.0
    %551 = vmatprep.subr.mxu0 0.0
    %552 = vmatpush2.msra.mxu0 0.0
    %553 = vmatprep.subr.mxu0 0.0
    %554 = vmatpush2.msra.mxu0 0.0
    %555 = vmatprep.subr.mxu0 0.0
    %556 = vmatpush2.msra.mxu0 0.0
    %557 = vmatprep.subr.mxu0 0.0
    %558 = vmatpush2.msra.mxu0 0.0
    %559 = vmatprep.subr.mxu0 0.0
    %560 = vmatpush2.msra.mxu0 0.0
    %561 = vmatprep.subr.mxu0 0.0
    %562 = vmatpush2.msra.mxu0 0.0
    %563 = vmatprep.subr.mxu0 0.0
    %564 = vmatpush2.msra.mxu0 0.0
    %565 = vmatprep.subr.mxu0 0.0
    %566 = vmatpush2.msra.mxu0 0.0
    %567 = vmatprep.subr.mxu0 0.0
    %568 = vmatpush2.msra.mxu0 0.0
    %569 = vmatprep.subr.mxu0 0.0
    %570 = vmatpush2.msra.mxu0 0.0
    %571 = vmatprep.subr.mxu0 0.0
    %572 = vmatpush2.msra.mxu0 0.0
    %573 = vmatprep.mubr.f32.mxu0 0.0
    %574 = vmatmul.mubr.f32.gmra.mxu0 %v501
    %v575 = vpop.f32.mrf.mxu0
    %v576 = vadd.f32 %v505, %v575
    %v577 = vpop.f32.mrf.mxu0
    %v578 = vadd.f32 %v506, %v577
    %579 = vdwg.mxu0
    %580 = vmatprep.subr.mxu0 %v106
    %581 = vmatpush1.msra.mxu0 %v105
    %582 = vmatprep.subr.mxu0 %v102
    %583 = vmatpush1.msra.mxu0 %v101
    %584 = vmatprep.subr.mxu0 %v98
    %585 = vmatpush1.msra.mxu0 %v97
    %586 = vmatprep.subr.mxu0 %v94
    %587 = vmatpush1.msra.mxu0 %v93
    %588 = vmatprep.subr.mxu0 %v90
    %589 = vmatpush1.msra.mxu0 %v89
    %590 = vmatprep.subr.mxu0 %v86
    %591 = vmatpush1.msra.mxu0 %v85
    %592 = vmatprep.subr.mxu0 %v82
    %593 = vmatpush1.msra.mxu0 %v81
    %594 = vmatprep.subr.mxu0 %v78
    %595 = vmatpush1.msra.mxu0 %v77
    %596 = vmatprep.subr.mxu0 %v74
    %597 = vmatpush1.msra.mxu0 %v73
    %598 = vmatprep.subr.mxu0 %v70
    %599 = vmatpush1.msra.mxu0 %v69
    %600 = vmatprep.subr.mxu0 %v66
    %601 = vmatpush1.msra.mxu0 %v65
    %602 = vmatprep.subr.mxu0 %v62
    %603 = vmatpush1.msra.mxu0 %v61
    %604 = vmatprep.subr.mxu0 %v58
    %605 = vmatpush1.msra.mxu0 %v57
    %606 = vmatprep.subr.mxu0 %v54
    %607 = vmatpush1.msra.mxu0 %v53
    %608 = vmatprep.subr.mxu0 %v50
    %609 = vmatpush1.msra.mxu0 %v49
    %610 = vmatprep.subr.mxu0 %v46
    %611 = vmatpush1.msra.mxu0 %v45
    %612 = vmatprep.subr.mxu0 0.0
    %613 = vmatpush2.msra.mxu0 0.0
    %614 = vmatprep.subr.mxu0 0.0
    %615 = vmatpush2.msra.mxu0 0.0
    %616 = vmatprep.subr.mxu0 0.0
    %617 = vmatpush2.msra.mxu0 0.0
    %618 = vmatprep.subr.mxu0 0.0
    %619 = vmatpush2.msra.mxu0 0.0
    %620 = vmatprep.subr.mxu0 0.0
    %621 = vmatpush2.msra.mxu0 0.0
    %622 = vmatprep.subr.mxu0 0.0
    %623 = vmatpush2.msra.mxu0 0.0
    %624 = vmatprep.subr.mxu0 0.0
    %625 = vmatpush2.msra.mxu0 0.0
    %626 = vmatprep.subr.mxu0 0.0
    %627 = vmatpush2.msra.mxu0 0.0
    %628 = vmatprep.subr.mxu0 0.0
    %629 = vmatpush2.msra.mxu0 0.0
    %630 = vmatprep.subr.mxu0 0.0
    %631 = vmatpush2.msra.mxu0 0.0
    %632 = vmatprep.subr.mxu0 0.0
    %633 = vmatpush2.msra.mxu0 0.0
    %634 = vmatprep.subr.mxu0 0.0
    %635 = vmatpush2.msra.mxu0 0.0
    %636 = vmatprep.subr.mxu0 0.0
    %637 = vmatpush2.msra.mxu0 0.0
    %638 = vmatprep.subr.mxu0 0.0
    %639 = vmatpush2.msra.mxu0 0.0
    %640 = vmatprep.subr.mxu0 0.0
    %641 = vmatpush2.msra.mxu0 0.0
    %642 = vmatprep.subr.mxu0 0.0
    %643 = vmatpush2.msra.mxu0 0.0
    %644 = vmatprep.mubr.f32.mxu0 0.0
    %645 = vmatmul.mubr.f32.gmra.mxu0 %v501
    %v646 = vpop.f32.mrf.mxu0
    %v647 = vadd.f32 %v507, %v646
    %v648 = vpop.f32.mrf.mxu0
    %v649 = vadd.f32 %v508, %v648
    %650 = vdwg.mxu0
    %v651 = vmul.f32 %v576, 0.5
    %v652 = vmul.f32 %v578, 0.5
    %v653 = vmul.f32 %v647, 0.5
    %v654 = vmul.f32 %v649, 0.5
    %v655 = vtanh.pop %v651
    %v656 = vtanh.pop %v652
    %v657 = vtanh.pop %v653
    %v658 = vtanh.pop %v654
    %v659 = vmul.f32 %v655, 0.5
    %v660 = vmul.f32 %v656, 0.5
    %v661 = vmul.f32 %v657, 0.5
    %v662 = vadd.f32 %v659, 0.5
    %v663 = vadd.f32 %v660, 0.5
    %v664 = vadd.f32 %v661, 0.5
    %v665 = vmul.f32 %v663, %v499
    %v666 = vmul.f32 %v662, %v658
    %v667 = vadd.f32 %v665, %v666
    %v668 = vtanh.pop %v667
    %v669 = vmul.f32 %v664, %v668
    %s670 = smul.u32 3, 4
    %s671 = smul.addr %s670, 8
    %s672 = scalar_lea.vmem [#allocation2], %s671
    %v673 = vld [vmem:[%s672] sm:$0xff]
    %v674 = vld [vmem:[%s672 + $0x8] sm:$0xff]
    %v675 = vld [vmem:[%s672 + $0x10] sm:$0xff]
    %v676 = vld [vmem:[%s672 + $0x18] sm:$0xff]
    %677 = vmatprep.subr.mxu0 %v104
    %678 = vmatpush1.msra.mxu0 %v103
    %679 = vmatprep.subr.mxu0 %v100
    %680 = vmatpush1.msra.mxu0 %v99
    %681 = vmatprep.subr.mxu0 %v96
    %682 = vmatpush1.msra.mxu0 %v95
    %683 = vmatprep.subr.mxu0 %v92
    %684 = vmatpush1.msra.mxu0 %v91
    %685 = vmatprep.subr.mxu0 %v88
    %686 = vmatpush1.msra.mxu0 %v87
    %687 = vmatprep.subr.mxu0 %v84
    %688 = vmatpush1.msra.mxu0 %v83
    %689 = vmatprep.subr.mxu0 %v80
    %690 = vmatpush1.msra.mxu0 %v79
    %691 = vmatprep.subr.mxu0 %v76
    %692 = vmatpush1.msra.mxu0 %v75
    %693 = vmatprep.subr.mxu0 %v72
    %694 = vmatpush1.msra.mxu0 %v71
    %695 = vmatprep.subr.mxu0 %v68
    %696 = vmatpush1.msra.mxu0 %v67
    %697 = vmatprep.subr.mxu0 %v64
    %698 = vmatpush1.msra.mxu0 %v63
    %699 = vmatprep.subr.mxu0 %v60
    %700 = vmatpush1.msra.mxu0 %v59
    %701 = vmatprep.subr.mxu0 %v56
    %702 = vmatpush1.msra.mxu0 %v55
    %703 = vmatprep.subr.mxu0 %v52
    %704 = vmatpush1.msra.mxu0 %v51
    %705 = vmatprep.subr.mxu0 %v48
    %706 = vmatpush1.msra.mxu0 %v47
    %707 = vmatprep.subr.mxu0 %v44
    %708 = vmatpush1.msra.mxu0 %v43
    %709 = vmatprep.subr.mxu0 0.0
    %710 = vmatpush2.msra.mxu0 0.0
    %711 = vmatprep.subr.mxu0 0.0
    %712 = vmatpush2.msra.mxu0 0.0
    %713 = vmatprep.subr.mxu0 0.0
    %714 = vmatpush2.msra.mxu0 0.0
    %715 = vmatprep.subr.mxu0 0.0
    %716 = vmatpush2.msra.mxu0 0.0
    %717 = vmatprep.subr.mxu0 0.0
    %718 = vmatpush2.msra.mxu0 0.0
    %719 = vmatprep.subr.mxu0 0.0
    %720 = vmatpush2.msra.mxu0 0.0
    %721 = vmatprep.subr.mxu0 0.0
    %722 = vmatpush2.msra.mxu0 0.0
    %723 = vmatprep.subr.mxu0 0.0
    %724 = vmatpush2.msra.mxu0 0.0
    %725 = vmatprep.subr.mxu0 0.0
    %726 = vmatpush2.msra.mxu0 0.0
    %727 = vmatprep.subr.mxu0 0.0
    %728 = vmatpush2.msra.mxu0 0.0
    %729 = vmatprep.subr.mxu0 0.0
    %730 = vmatpush2.msra.mxu0 0.0
    %731 = vmatprep.subr.mxu0 0.0
    %732 = vmatpush2.msra.mxu0 0.0
    %733 = vmatprep.subr.mxu0 0.0
    %734 = vmatpush2.msra.mxu0 0.0
    %735 = vmatprep.subr.mxu0 0.0
    %736 = vmatpush2.msra.mxu0 0.0
    %737 = vmatprep.subr.mxu0 0.0
    %738 = vmatpush2.msra.mxu0 0.0
    %739 = vmatprep.subr.mxu0 0.0
    %740 = vmatpush2.msra.mxu0 0.0
    %741 = vmatprep.mubr.f32.mxu0 0.0
    %742 = vmatmul.mubr.f32.gmra.mxu0 %v669
    %v743 = vpop.f32.mrf.mxu0
    %v744 = vadd.f32 %v673, %v743
    %v745 = vpop.f32.mrf.mxu0
    %v746 = vadd.f32 %v674, %v745
    %747 = vdwg.mxu0
    %748 = vmatprep.subr.mxu0 %v106
    %749 = vmatpush1.msra.mxu0 %v105
    %750 = vmatprep.subr.mxu0 %v102
    %751 = vmatpush1.msra.mxu0 %v101
    %752 = vmatprep.subr.mxu0 %v98
    %753 = vmatpush1.msra.mxu0 %v97
    %754 = vmatprep.subr.mxu0 %v94
    %755 = vmatpush1.msra.mxu0 %v93
    %756 = vmatprep.subr.mxu0 %v90
    %757 = vmatpush1.msra.mxu0 %v89
    %758 = vmatprep.subr.mxu0 %v86
    %759 = vmatpush1.msra.mxu0 %v85
    %760 = vmatprep.subr.mxu0 %v82
    %761 = vmatpush1.msra.mxu0 %v81
    %762 = vmatprep.subr.mxu0 %v78
    %763 = vmatpush1.msra.mxu0 %v77
    %764 = vmatprep.subr.mxu0 %v74
    %765 = vmatpush1.msra.mxu0 %v73
    %766 = vmatprep.subr.mxu0 %v70
    %767 = vmatpush1.msra.mxu0 %v69
    %768 = vmatprep.subr.mxu0 %v66
    %769 = vmatpush1.msra.mxu0 %v65
    %770 = vmatprep.subr.mxu0 %v62
    %771 = vmatpush1.msra.mxu0 %v61
    %772 = vmatprep.subr.mxu0 %v58
    %773 = vmatpush1.msra.mxu0 %v57
    %774 = vmatprep.subr.mxu0 %v54
    %775 = vmatpush1.msra.mxu0 %v53
    %776 = vmatprep.subr.mxu0 %v50
    %777 = vmatpush1.msra.mxu0 %v49
    %778 = vmatprep.subr.mxu0 %v46
    %779 = vmatpush1.msra.mxu0 %v45
    %780 = vmatprep.subr.mxu0 0.0
    %781 = vmatpush2.msra.mxu0 0.0
    %782 = vmatprep.subr.mxu0 0.0
    %783 = vmatpush2.msra.mxu0 0.0
    %784 = vmatprep.subr.mxu0 0.0
    %785 = vmatpush2.msra.mxu0 0.0
    %786 = vmatprep.subr.mxu0 0.0
    %787 = vmatpush2.msra.mxu0 0.0
    %788 = vmatprep.subr.mxu0 0.0
    %789 = vmatpush2.msra.mxu0 0.0
    %790 = vmatprep.subr.mxu0 0.0
    %791 = vmatpush2.msra.mxu0 0.0
    %792 = vmatprep.subr.mxu0 0.0
    %793 = vmatpush2.msra.mxu0 0.0
    %794 = vmatprep.subr.mxu0 0.0
    %795 = vmatpush2.msra.mxu0 0.0
    %796 = vmatprep.subr.mxu0 0.0
    %797 = vmatpush2.msra.mxu0 0.0
    %798 = vmatprep.subr.mxu0 0.0
    %799 = vmatpush2.msra.mxu0 0.0
    %800 = vmatprep.subr.mxu0 0.0
    %801 = vmatpush2.msra.mxu0 0.0
    %802 = vmatprep.subr.mxu0 0.0
    %803 = vmatpush2.msra.mxu0 0.0
    %804 = vmatprep.subr.mxu0 0.0
    %805 = vmatpush2.msra.mxu0 0.0
    %806 = vmatprep.subr.mxu0 0.0
    %807 = vmatpush2.msra.mxu0 0.0
    %808 = vmatprep.subr.mxu0 0.0
    %809 = vmatpush2.msra.mxu0 0.0
    %810 = vmatprep.subr.mxu0 0.0
    %811 = vmatpush2.msra.mxu0 0.0
    %812 = vmatprep.mubr.f32.mxu0 0.0
    %813 = vmatmul.mubr.f32.gmra.mxu0 %v669
    %v814 = vpop.f32.mrf.mxu0
    %v815 = vadd.f32 %v675, %v814
    %v816 = vpop.f32.mrf.mxu0
    %v817 = vadd.f32 %v676, %v816
    %818 = vdwg.mxu0
    %v819 = vmul.f32 %v744, 0.5
    %v820 = vmul.f32 %v746, 0.5
    %v821 = vmul.f32 %v815, 0.5
    %v822 = vmul.f32 %v817, 0.5
    %v823 = vtanh.pop %v819
    %v824 = vtanh.pop %v820
    %v825 = vtanh.pop %v821
    %v826 = vtanh.pop %v822
    %v827 = vmul.f32 %v823, 0.5
    %v828 = vmul.f32 %v824, 0.5
    %v829 = vmul.f32 %v825, 0.5
    %v830 = vadd.f32 %v827, 0.5
    %v831 = vadd.f32 %v828, 0.5
    %v832 = vadd.f32 %v829, 0.5
    %v833 = vmul.f32 %v831, %v667
    %v834 = vmul.f32 %v830, %v826
    %v835 = vadd.f32 %v833, %v834
    %v836 = vtanh.pop %v835
    %v837 = vmul.f32 %v832, %v836
    %s838 = smul.u32 4, 4
    %s839 = smul.addr %s838, 8
    %s840 = scalar_lea.vmem [#allocation2], %s839
    %v841 = vld [vmem:[%s840] sm:$0xff]
    %v842 = vld [vmem:[%s840 + $0x8] sm:$0xff]
    %v843 = vld [vmem:[%s840 + $0x10] sm:$0xff]
    %v844 = vld [vmem:[%s840 + $0x18] sm:$0xff]
    %845 = vmatprep.subr.mxu0 %v104
    %846 = vmatpush1.msra.mxu0 %v103
    %847 = vmatprep.subr.mxu0 %v100
    %848 = vmatpush1.msra.mxu0 %v99
    %849 = vmatprep.subr.mxu0 %v96
    %850 = vmatpush1.msra.mxu0 %v95
    %851 = vmatprep.subr.mxu0 %v92
    %852 = vmatpush1.msra.mxu0 %v91
    %853 = vmatprep.subr.mxu0 %v88
    %854 = vmatpush1.msra.mxu0 %v87
    %855 = vmatprep.subr.mxu0 %v84
    %856 = vmatpush1.msra.mxu0 %v83
    %857 = vmatprep.subr.mxu0 %v80
    %858 = vmatpush1.msra.mxu0 %v79
    %859 = vmatprep.subr.mxu0 %v76
    %860 = vmatpush1.msra.mxu0 %v75
    %861 = vmatprep.subr.mxu0 %v72
    %862 = vmatpush1.msra.mxu0 %v71
    %863 = vmatprep.subr.mxu0 %v68
    %864 = vmatpush1.msra.mxu0 %v67
    %865 = vmatprep.subr.mxu0 %v64
    %866 = vmatpush1.msra.mxu0 %v63
    %867 = vmatprep.subr.mxu0 %v60
    %868 = vmatpush1.msra.mxu0 %v59
    %869 = vmatprep.subr.mxu0 %v56
    %870 = vmatpush1.msra.mxu0 %v55
    %871 = vmatprep.subr.mxu0 %v52
    %872 = vmatpush1.msra.mxu0 %v51
    %873 = vmatprep.subr.mxu0 %v48
    %874 = vmatpush1.msra.mxu0 %v47
    %875 = vmatprep.subr.mxu0 %v44
    %876 = vmatpush1.msra.mxu0 %v43
    %877 = vmatprep.subr.mxu0 0.0
    %878 = vmatpush2.msra.mxu0 0.0
    %879 = vmatprep.subr.mxu0 0.0
    %880 = vmatpush2.msra.mxu0 0.0
    %881 = vmatprep.subr.mxu0 0.0
    %882 = vmatpush2.msra.mxu0 0.0
    %883 = vmatprep.subr.mxu0 0.0
    %884 = vmatpush2.msra.mxu0 0.0
    %885 = vmatprep.subr.mxu0 0.0
    %886 = vmatpush2.msra.mxu0 0.0
    %887 = vmatprep.subr.mxu0 0.0
    %888 = vmatpush2.msra.mxu0 0.0
    %889 = vmatprep.subr.mxu0 0.0
    %890 = vmatpush2.msra.mxu0 0.0
    %891 = vmatprep.subr.mxu0 0.0
    %892 = vmatpush2.msra.mxu0 0.0
    %893 = vmatprep.subr.mxu0 0.0
    %894 = vmatpush2.msra.mxu0 0.0
    %895 = vmatprep.subr.mxu0 0.0
    %896 = vmatpush2.msra.mxu0 0.0
    %897 = vmatprep.subr.mxu0 0.0
    %898 = vmatpush2.msra.mxu0 0.0
    %899 = vmatprep.subr.mxu0 0.0
    %900 = vmatpush2.msra.mxu0 0.0
    %901 = vmatprep.subr.mxu0 0.0
    %902 = vmatpush2.msra.mxu0 0.0
    %903 = vmatprep.subr.mxu0 0.0
    %904 = vmatpush2.msra.mxu0 0.0
    %905 = vmatprep.subr.mxu0 0.0
    %906 = vmatpush2.msra.mxu0 0.0
    %907 = vmatprep.subr.mxu0 0.0
    %908 = vmatpush2.msra.mxu0 0.0
    %909 = vmatprep.mubr.f32.mxu0 0.0
    %910 = vmatmul.mubr.f32.gmra.mxu0 %v837
    %v911 = vpop.f32.mrf.mxu0
    %v912 = vadd.f32 %v841, %v911
    %v913 = vpop.f32.mrf.mxu0
    %v914 = vadd.f32 %v842, %v913
    %915 = vdwg.mxu0
    %916 = vmatprep.subr.mxu0 %v106
    %917 = vmatpush1.msra.mxu0 %v105
    %918 = vmatprep.subr.mxu0 %v102
    %919 = vmatpush1.msra.mxu0 %v101
    %920 = vmatprep.subr.mxu0 %v98
    %921 = vmatpush1.msra.mxu0 %v97
    %922 = vmatprep.subr.mxu0 %v94
    %923 = vmatpush1.msra.mxu0 %v93
    %924 = vmatprep.subr.mxu0 %v90
    %925 = vmatpush1.msra.mxu0 %v89
    %926 = vmatprep.subr.mxu0 %v86
    %927 = vmatpush1.msra.mxu0 %v85
    %928 = vmatprep.subr.mxu0 %v82
    %929 = vmatpush1.msra.mxu0 %v81
    %930 = vmatprep.subr.mxu0 %v78
    %931 = vmatpush1.msra.mxu0 %v77
    %932 = vmatprep.subr.mxu0 %v74
    %933 = vmatpush1.msra.mxu0 %v73
    %934 = vmatprep.subr.mxu0 %v70
    %935 = vmatpush1.msra.mxu0 %v69
    %936 = vmatprep.subr.mxu0 %v66
    %937 = vmatpush1.msra.mxu0 %v65
    %938 = vmatprep.subr.mxu0 %v62
    %939 = vmatpush1.msra.mxu0 %v61
    %940 = vmatprep.subr.mxu0 %v58
    %941 = vmatpush1.msra.mxu0 %v57
    %942 = vmatprep.subr.mxu0 %v54
    %943 = vmatpush1.msra.mxu0 %v53
    %944 = vmatprep.subr.mxu0 %v50
    %945 = vmatpush1.msra.mxu0 %v49
    %946 = vmatprep.subr.mxu0 %v46
    %947 = vmatpush1.msra.mxu0 %v45
    %948 = vmatprep.subr.mxu0 0.0
    %949 = vmatpush2.msra.mxu0 0.0
    %950 = vmatprep.subr.mxu0 0.0
    %951 = vmatpush2.msra.mxu0 0.0
    %952 = vmatprep.subr.mxu0 0.0
    %953 = vmatpush2.msra.mxu0 0.0
    %954 = vmatprep.subr.mxu0 0.0
    %955 = vmatpush2.msra.mxu0 0.0
    %956 = vmatprep.subr.mxu0 0.0
    %957 = vmatpush2.msra.mxu0 0.0
    %958 = vmatprep.subr.mxu0 0.0
    %959 = vmatpush2.msra.mxu0 0.0
    %960 = vmatprep.subr.mxu0 0.0
    %961 = vmatpush2.msra.mxu0 0.0
    %962 = vmatprep.subr.mxu0 0.0
    %963 = vmatpush2.msra.mxu0 0.0
    %964 = vmatprep.subr.mxu0 0.0
    %965 = vmatpush2.msra.mxu0 0.0
    %966 = vmatprep.subr.mxu0 0.0
    %967 = vmatpush2.msra.mxu0 0.0
    %968 = vmatprep.subr.mxu0 0.0
    %969 = vmatpush2.msra.mxu0 0.0
    %970 = vmatprep.subr.mxu0 0.0
    %971 = vmatpush2.msra.mxu0 0.0
    %972 = vmatprep.subr.mxu0 0.0
    %973 = vmatpush2.msra.mxu0 0.0
    %974 = vmatprep.subr.mxu0 0.0
    %975 = vmatpush2.msra.mxu0 0.0
    %976 = vmatprep.subr.mxu0 0.0
    %977 = vmatpush2.msra.mxu0 0.0
    %978 = vmatprep.subr.mxu0 0.0
    %979 = vmatpush2.msra.mxu0 0.0
    %980 = vmatprep.mubr.f32.mxu0 0.0
    %981 = vmatmul.mubr.f32.gmra.mxu0 %v837
    %v982 = vpop.f32.mrf.mxu0
    %v983 = vadd.f32 %v843, %v982
    %v984 = vpop.f32.mrf.mxu0
    %v985 = vadd.f32 %v844, %v984
    %986 = vdwg.mxu0
    %v987 = vmul.f32 %v912, 0.5
    %v988 = vmul.f32 %v914, 0.5
    %v989 = vmul.f32 %v983, 0.5
    %v990 = vmul.f32 %v985, 0.5
    %v991 = vtanh.pop %v987
    %v992 = vtanh.pop %v988
    %v993 = vtanh.pop %v989
    %v994 = vtanh.pop %v990
    %v995 = vmul.f32 %v991, 0.5
    %v996 = vmul.f32 %v992, 0.5
    %v997 = vmul.f32 %v993, 0.5
    %v998 = vadd.f32 %v995, 0.5
    %v999 = vadd.f32 %v996, 0.5
    %v1000 = vadd.f32 %v997, 0.5
    %v1001 = vmul.f32 %v999, %v835
    %v1002 = vmul.f32 %v998, %v994
    %v1003 = vadd.f32 %v1001, %v1002
    %v1004 = vtanh.pop %v1003
    %v1005 = vmul.f32 %v1000, %v1004
    %s1006 = smul.u32 5, 4
    %s1007 = smul.addr %s1006, 8
    %s1008 = scalar_lea.vmem [#allocation2], %s1007
    %v1009 = vld [vmem:[%s1008] sm:$0xff]
    %v1010 = vld [vmem:[%s1008 + $0x8] sm:$0xff]
    %v1011 = vld [vmem:[%s1008 + $0x10] sm:$0xff]
    %v1012 = vld [vmem:[%s1008 + $0x18] sm:$0xff]
    %1013 = vmatprep.subr.mxu0 %v104
    %1014 = vmatpush1.msra.mxu0 %v103
    %1015 = vmatprep.subr.mxu0 %v100
    %1016 = vmatpush1.msra.mxu0 %v99
    %1017 = vmatprep.subr.mxu0 %v96
    %1018 = vmatpush1.msra.mxu0 %v95
    %1019 = vmatprep.subr.mxu0 %v92
    %1020 = vmatpush1.msra.mxu0 %v91
    %1021 = vmatprep.subr.mxu0 %v88
    %1022 = vmatpush1.msra.mxu0 %v87
    %1023 = vmatprep.subr.mxu0 %v84
    %1024 = vmatpush1.msra.mxu0 %v83
    %1025 = vmatprep.subr.mxu0 %v80
    %1026 = vmatpush1.msra.mxu0 %v79
    %1027 = vmatprep.subr.mxu0 %v76
    %1028 = vmatpush1.msra.mxu0 %v75
    %1029 = vmatprep.subr.mxu0 %v72
    %1030 = vmatpush1.msra.mxu0 %v71
    %1031 = vmatprep.subr.mxu0 %v68
    %1032 = vmatpush1.msra.mxu0 %v67
    %1033 = vmatprep.subr.mxu0 %v64
    %1034 = vmatpush1.msra.mxu0 %v63
    %1035 = vmatprep.subr.mxu0 %v60
    %1036 = vmatpush1.msra.mxu0 %v59
    %1037 = vmatprep.subr.mxu0 %v56
    %1038 = vmatpush1.msra.mxu0 %v55
    %1039 = vmatprep.subr.mxu0 %v52
    %1040 = vmatpush1.msra.mxu0 %v51
    %1041 = vmatprep.subr.mxu0 %v48
    %1042 = vmatpush1.msra.mxu0 %v47
    %1043 = vmatprep.subr.mxu0 %v44
    %1044 = vmatpush1.msra.mxu0 %v43
    %1045 = vmatprep.subr.mxu0 0.0
    %1046 = vmatpush2.msra.mxu0 0.0
    %1047 = vmatprep.subr.mxu0 0.0
    %1048 = vmatpush2.msra.mxu0 0.0
    %1049 = vmatprep.subr.mxu0 0.0
    %1050 = vmatpush2.msra.mxu0 0.0
    %1051 = vmatprep.subr.mxu0 0.0
    %1052 = vmatpush2.msra.mxu0 0.0
    %1053 = vmatprep.subr.mxu0 0.0
    %1054 = vmatpush2.msra.mxu0 0.0
    %1055 = vmatprep.subr.mxu0 0.0
    %1056 = vmatpush2.msra.mxu0 0.0
    %1057 = vmatprep.subr.mxu0 0.0
    %1058 = vmatpush2.msra.mxu0 0.0
    %1059 = vmatprep.subr.mxu0 0.0
    %1060 = vmatpush2.msra.mxu0 0.0
    %1061 = vmatprep.subr.mxu0 0.0
    %1062 = vmatpush2.msra.mxu0 0.0
    %1063 = vmatprep.subr.mxu0 0.0
    %1064 = vmatpush2.msra.mxu0 0.0
    %1065 = vmatprep.subr.mxu0 0.0
    %1066 = vmatpush2.msra.mxu0 0.0
    %1067 = vmatprep.subr.mxu0 0.0
    %1068 = vmatpush2.msra.mxu0 0.0
    %1069 = vmatprep.subr.mxu0 0.0
    %1070 = vmatpush2.msra.mxu0 0.0
    %1071 = vmatprep.subr.mxu0 0.0
    %1072 = vmatpush2.msra.mxu0 0.0
    %1073 = vmatprep.subr.mxu0 0.0
    %1074 = vmatpush2.msra.mxu0 0.0
    %1075 = vmatprep.subr.mxu0 0.0
    %1076 = vmatpush2.msra.mxu0 0.0
    %1077 = vmatprep.mubr.f32.mxu0 0.0
    %1078 = vmatmul.mubr.f32.gmra.mxu0 %v1005
    %v1079 = vpop.f32.mrf.mxu0
    %v1080 = vadd.f32 %v1009, %v1079
    %v1081 = vpop.f32.mrf.mxu0
    %v1082 = vadd.f32 %v1010, %v1081
    %1083 = vdwg.mxu0
    %1084 = vmatprep.subr.mxu0 %v106
    %1085 = vmatpush1.msra.mxu0 %v105
    %1086 = vmatprep.subr.mxu0 %v102
    %1087 = vmatpush1.msra.mxu0 %v101
    %1088 = vmatprep.subr.mxu0 %v98
    %1089 = vmatpush1.msra.mxu0 %v97
    %1090 = vmatprep.subr.mxu0 %v94
    %1091 = vmatpush1.msra.mxu0 %v93
    %1092 = vmatprep.subr.mxu0 %v90
    %1093 = vmatpush1.msra.mxu0 %v89
    %1094 = vmatprep.subr.mxu0 %v86
    %1095 = vmatpush1.msra.mxu0 %v85
    %1096 = vmatprep.subr.mxu0 %v82
    %1097 = vmatpush1.msra.mxu0 %v81
    %1098 = vmatprep.subr.mxu0 %v78
    %1099 = vmatpush1.msra.mxu0 %v77
    %1100 = vmatprep.subr.mxu0 %v74
    %1101 = vmatpush1.msra.mxu0 %v73
    %1102 = vmatprep.subr.mxu0 %v70
    %1103 = vmatpush1.msra.mxu0 %v69
    %1104 = vmatprep.subr.mxu0 %v66
    %1105 = vmatpush1.msra.mxu0 %v65
    %1106 = vmatprep.subr.mxu0 %v62
    %1107 = vmatpush1.msra.mxu0 %v61
    %1108 = vmatprep.subr.mxu0 %v58
    %1109 = vmatpush1.msra.mxu0 %v57
    %1110 = vmatprep.subr.mxu0 %v54
    %1111 = vmatpush1.msra.mxu0 %v53
    %1112 = vmatprep.subr.mxu0 %v50
    %1113 = vmatpush1.msra.mxu0 %v49
    %1114 = vmatprep.subr.mxu0 %v46
    %1115 = vmatpush1.msra.mxu0 %v45
    %1116 = vmatprep.subr.mxu0 0.0
    %1117 = vmatpush2.msra.mxu0 0.0
    %1118 = vmatprep.subr.mxu0 0.0
    %1119 = vmatpush2.msra.mxu0 0.0
    %1120 = vmatprep.subr.mxu0 0.0
    %1121 = vmatpush2.msra.mxu0 0.0
    %1122 = vmatprep.subr.mxu0 0.0
    %1123 = vmatpush2.msra.mxu0 0.0
    %1124 = vmatprep.subr.mxu0 0.0
    %1125 = vmatpush2.msra.mxu0 0.0
    %1126 = vmatprep.subr.mxu0 0.0
    %1127 = vmatpush2.msra.mxu0 0.0
    %1128 = vmatprep.subr.mxu0 0.0
    %1129 = vmatpush2.msra.mxu0 0.0
    %1130 = vmatprep.subr.mxu0 0.0
    %1131 = vmatpush2.msra.mxu0 0.0
    %1132 = vmatprep.subr.mxu0 0.0
    %1133 = vmatpush2.msra.mxu0 0.0
    %1134 = vmatprep.subr.mxu0 0.0
    %1135 = vmatpush2.msra.mxu0 0.0
    %1136 = vmatprep.subr.mxu0 0.0
    %1137 = vmatpush2.msra.mxu0 0.0
    %1138 = vmatprep.subr.mxu0 0.0
    %1139 = vmatpush2.msra.mxu0 0.0
    %1140 = vmatprep.subr.mxu0 0.0
    %1141 = vmatpush2.msra.mxu0 0.0
    %1142 = vmatprep.subr.mxu0 0.0
    %1143 = vmatpush2.msra.mxu0 0.0
    %1144 = vmatprep.subr.mxu0 0.0
    %1145 = vmatpush2.msra.mxu0 0.0
    %1146 = vmatprep.subr.mxu0 0.0
    %1147 = vmatpush2.msra.mxu0 0.0
    %1148 = vmatprep.mubr.f32.mxu0 0.0
    %1149 = vmatmul.mubr.f32.gmra.mxu0 %v1005
    %v1150 = vpop.f32.mrf.mxu0
    %v1151 = vadd.f32 %v1011, %v1150
    %v1152 = vpop.f32.mrf.mxu0
    %v1153 = vadd.f32 %v1012, %v1152
    %1154 = vdwg.mxu0
    %v1155 = vmul.f32 %v1080, 0.5
    %v1156 = vmul.f32 %v1082, 0.5
    %v1157 = vmul.f32 %v1151, 0.5
    %v1158 = vmul.f32 %v1153, 0.5
    %v1159 = vtanh.pop %v1155
    %v1160 = vtanh.pop %v1156
    %v1161 = vtanh.pop %v1157
    %v1162 = vtanh.pop %v1158
    %v1163 = vmul.f32 %v1159, 0.5
    %v1164 = vmul.f32 %v1160, 0.5
    %v1165 = vmul.f32 %v1161, 0.5
    %v1166 = vadd.f32 %v1163, 0.5
    %v1167 = vadd.f32 %v1164, 0.5
    %v1168 = vadd.f32 %v1165, 0.5
    %v1169 = vmul.f32 %v1167, %v1003
    %v1170 = vmul.f32 %v1166, %v1162
    %v1171 = vadd.f32 %v1169, %v1170
    %v1172 = vtanh.pop %v1171
    %v1173 = vmul.f32 %v1168, %v1172
    %s1174 = smul.u32 6, 4
    %s1175 = smul.addr %s1174, 8
    %s1176 = scalar_lea.vmem [#allocation2], %s1175
    %v1177 = vld [vmem:[%s1176] sm:$0xff]
    %v1178 = vld [vmem:[%s1176 + $0x8] sm:$0xff]
    %v1179 = vld [vmem:[%s1176 + $0x10] sm:$0xff]
    %v1180 = vld [vmem:[%s1176 + $0x18] sm:$0xff]
    %1181 = vmatprep.subr.mxu0 %v104
    %1182 = vmatpush1.msra.mxu0 %v103
    %1183 = vmatprep.subr.mxu0 %v100
    %1184 = vmatpush1.msra.mxu0 %v99
    %1185 = vmatprep.subr.mxu0 %v96
    %1186 = vmatpush1.msra.mxu0 %v95
    %1187 = vmatprep.subr.mxu0 %v92
    %1188 = vmatpush1.msra.mxu0 %v91
    %1189 = vmatprep.subr.mxu0 %v88
    %1190 = vmatpush1.msra.mxu0 %v87
    %1191 = vmatprep.subr.mxu0 %v84
    %1192 = vmatpush1.msra.mxu0 %v83
    %1193 = vmatprep.subr.mxu0 %v80
    %1194 = vmatpush1.msra.mxu0 %v79
    %1195 = vmatprep.subr.mxu0 %v76
    %1196 = vmatpush1.msra.mxu0 %v75
    %1197 = vmatprep.subr.mxu0 %v72
    %1198 = vmatpush1.msra.mxu0 %v71
    %1199 = vmatprep.subr.mxu0 %v68
    %1200 = vmatpush1.msra.mxu0 %v67
    %1201 = vmatprep.subr.mxu0 %v64
    %1202 = vmatpush1.msra.mxu0 %v63
    %1203 = vmatprep.subr.mxu0 %v60
    %1204 = vmatpush1.msra.mxu0 %v59
    %1205 = vmatprep.subr.mxu0 %v56
    %1206 = vmatpush1.msra.mxu0 %v55
    %1207 = vmatprep.subr.mxu0 %v52
    %1208 = vmatpush1.msra.mxu0 %v51
    %1209 = vmatprep.subr.mxu0 %v48
    %1210 = vmatpush1.msra.mxu0 %v47
    %1211 = vmatprep.subr.mxu0 %v44
    %1212 = vmatpush1.msra.mxu0 %v43
    %1213 = vmatprep.subr.mxu0 0.0
    %1214 = vmatpush2.msra.mxu0 0.0
    %1215 = vmatprep.subr.mxu0 0.0
    %1216 = vmatpush2.msra.mxu0 0.0
    %1217 = vmatprep.subr.mxu0 0.0
    %1218 = vmatpush2.msra.mxu0 0.0
    %1219 = vmatprep.subr.mxu0 0.0
    %1220 = vmatpush2.msra.mxu0 0.0
    %1221 = vmatprep.subr.mxu0 0.0
    %1222 = vmatpush2.msra.mxu0 0.0
    %1223 = vmatprep.subr.mxu0 0.0
    %1224 = vmatpush2.msra.mxu0 0.0
    %1225 = vmatprep.subr.mxu0 0.0
    %1226 = vmatpush2.msra.mxu0 0.0
    %1227 = vmatprep.subr.mxu0 0.0
    %1228 = vmatpush2.msra.mxu0 0.0
    %1229 = vmatprep.subr.mxu0 0.0
    %1230 = vmatpush2.msra.mxu0 0.0
    %1231 = vmatprep.subr.mxu0 0.0
    %1232 = vmatpush2.msra.mxu0 0.0
    %1233 = vmatprep.subr.mxu0 0.0
    %1234 = vmatpush2.msra.mxu0 0.0
    %1235 = vmatprep.subr.mxu0 0.0
    %1236 = vmatpush2.msra.mxu0 0.0
    %1237 = vmatprep.subr.mxu0 0.0
    %1238 = vmatpush2.msra.mxu0 0.0
    %1239 = vmatprep.subr.mxu0 0.0
    %1240 = vmatpush2.msra.mxu0 0.0
    %1241 = vmatprep.subr.mxu0 0.0
    %1242 = vmatpush2.msra.mxu0 0.0
    %1243 = vmatprep.subr.mxu0 0.0
    %1244 = vmatpush2.msra.mxu0 0.0
    %1245 = vmatprep.mubr.f32.mxu0 0.0
    %1246 = vmatmul.mubr.f32.gmra.mxu0 %v1173
    %v1247 = vpop.f32.mrf.mxu0
    %v1248 = vadd.f32 %v1177, %v1247
    %v1249 = vpop.f32.mrf.mxu0
    %v1250 = vadd.f32 %v1178, %v1249
    %1251 = vdwg.mxu0
    %1252 = vmatprep.subr.mxu0 %v106
    %1253 = vmatpush1.msra.mxu0 %v105
    %1254 = vmatprep.subr.mxu0 %v102
    %1255 = vmatpush1.msra.mxu0 %v101
    %1256 = vmatprep.subr.mxu0 %v98
    %1257 = vmatpush1.msra.mxu0 %v97
    %1258 = vmatprep.subr.mxu0 %v94
    %1259 = vmatpush1.msra.mxu0 %v93
    %1260 = vmatprep.subr.mxu0 %v90
    %1261 = vmatpush1.msra.mxu0 %v89
    %1262 = vmatprep.subr.mxu0 %v86
    %1263 = vmatpush1.msra.mxu0 %v85
    %1264 = vmatprep.subr.mxu0 %v82
    %1265 = vmatpush1.msra.mxu0 %v81
    %1266 = vmatprep.subr.mxu0 %v78
    %1267 = vmatpush1.msra.mxu0 %v77
    %1268 = vmatprep.subr.mxu0 %v74
    %1269 = vmatpush1.msra.mxu0 %v73
    %1270 = vmatprep.subr.mxu0 %v70
    %1271 = vmatpush1.msra.mxu0 %v69
    %1272 = vmatprep.subr.mxu0 %v66
    %1273 = vmatpush1.msra.mxu0 %v65
    %1274 = vmatprep.subr.mxu0 %v62
    %1275 = vmatpush1.msra.mxu0 %v61
    %1276 = vmatprep.subr.mxu0 %v58
    %1277 = vmatpush1.msra.mxu0 %v57
    %1278 = vmatprep.subr.mxu0 %v54
    %1279 = vmatpush1.msra.mxu0 %v53
    %1280 = vmatprep.subr.mxu0 %v50
    %1281 = vmatpush1.msra.mxu0 %v49
    %1282 = vmatprep.subr.mxu0 %v46
    %1283 = vmatpush1.msra.mxu0 %v45
    %1284 = vmatprep.subr.mxu0 0.0
    %1285 = vmatpush2.msra.mxu0 0.0
    %1286 = vmatprep.subr.mxu0 0.0
    %1287 = vmatpush2.msra.mxu0 0.0
    %1288 = vmatprep.subr.mxu0 0.0
    %1289 = vmatpush2.msra.mxu0 0.0
    %1290 = vmatprep.subr.mxu0 0.0
    %1291 = vmatpush2.msra.mxu0 0.0
    %1292 = vmatprep.subr.mxu0 0.0
    %1293 = vmatpush2.msra.mxu0 0.0
    %1294 = vmatprep.subr.mxu0 0.0
    %1295 = vmatpush2.msra.mxu0 0.0
    %1296 = vmatprep.subr.mxu0 0.0
    %1297 = vmatpush2.msra.mxu0 0.0
    %1298 = vmatprep.subr.mxu0 0.0
    %1299 = vmatpush2.msra.mxu0 0.0
    %1300 = vmatprep.subr.mxu0 0.0
    %1301 = vmatpush2.msra.mxu0 0.0
    %1302 = vmatprep.subr.mxu0 0.0
    %1303 = vmatpush2.msra.mxu0 0.0
    %1304 = vmatprep.subr.mxu0 0.0
    %1305 = vmatpush2.msra.mxu0 0.0
    %1306 = vmatprep.subr.mxu0 0.0
    %1307 = vmatpush2.msra.mxu0 0.0
    %1308 = vmatprep.subr.mxu0 0.0
    %1309 = vmatpush2.msra.mxu0 0.0
    %1310 = vmatprep.subr.mxu0 0.0
    %1311 = vmatpush2.msra.mxu0 0.0
    %1312 = vmatprep.subr.mxu0 0.0
    %1313 = vmatpush2.msra.mxu0 0.0
    %1314 = vmatprep.subr.mxu0 0.0
    %1315 = vmatpush2.msra.mxu0 0.0
    %1316 = vmatprep.mubr.f32.mxu0 0.0
    %1317 = vmatmul.mubr.f32.gmra.mxu0 %v1173
    %v1318 = vpop.f32.mrf.mxu0
    %v1319 = vadd.f32 %v1179, %v1318
    %v1320 = vpop.f32.mrf.mxu0
    %v1321 = vadd.f32 %v1180, %v1320
    %1322 = vdwg.mxu0
    %v1323 = vmul.f32 %v1248, 0.5
    %v1324 = vmul.f32 %v1250, 0.5
    %v1325 = vmul.f32 %v1319, 0.5
    %v1326 = vmul.f32 %v1321, 0.5
    %v1327 = vtanh.pop %v1323
    %v1328 = vtanh.pop %v1324
    %v1329 = vtanh.pop %v1325
    %v1330 = vtanh.pop %v1326
    %v1331 = vmul.f32 %v1327, 0.5
    %v1332 = vmul.f32 %v1328, 0.5
    %v1333 = vmul.f32 %v1329, 0.5
    %v1334 = vadd.f32 %v1331, 0.5
    %v1335 = vadd.f32 %v1332, 0.5
    %v1336 = vadd.f32 %v1333, 0.5
    %v1337 = vmul.f32 %v1335, %v1171
    %v1338 = vmul.f32 %v1334, %v1330
    %v1339 = vadd.f32 %v1337, %v1338
    %v1340 = vtanh.pop %v1339
    %v1341 = vmul.f32 %v1336, %v1340
    %s1342 = smul.u32 7, 4
    %s1343 = smul.addr %s1342, 8
    %s1344 = scalar_lea.vmem [#allocation2], %s1343
    %v1345 = vld [vmem:[%s1344] sm:$0xff]
    %v1346 = vld [vmem:[%s1344 + $0x8] sm:$0xff]
    %v1347 = vld [vmem:[%s1344 + $0x10] sm:$0xff]
    %v1348 = vld [vmem:[%s1344 + $0x18] sm:$0xff]
    %1349 = vmatprep.subr.mxu0 %v104
    %1350 = vmatpush1.msra.mxu0 %v103
    %1351 = vmatprep.subr.mxu0 %v100
    %1352 = vmatpush1.msra.mxu0 %v99
    %1353 = vmatprep.subr.mxu0 %v96
    %1354 = vmatpush1.msra.mxu0 %v95
    %1355 = vmatprep.subr.mxu0 %v92
    %1356 = vmatpush1.msra.mxu0 %v91
    %1357 = vmatprep.subr.mxu0 %v88
    %1358 = vmatpush1.msra.mxu0 %v87
    %1359 = vmatprep.subr.mxu0 %v84
    %1360 = vmatpush1.msra.mxu0 %v83
    %1361 = vmatprep.subr.mxu0 %v80
    %1362 = vmatpush1.msra.mxu0 %v79
    %1363 = vmatprep.subr.mxu0 %v76
    %1364 = vmatpush1.msra.mxu0 %v75
    %1365 = vmatprep.subr.mxu0 %v72
    %1366 = vmatpush1.msra.mxu0 %v71
    %1367 = vmatprep.subr.mxu0 %v68
    %1368 = vmatpush1.msra.mxu0 %v67
    %1369 = vmatprep.subr.mxu0 %v64
    %1370 = vmatpush1.msra.mxu0 %v63
    %1371 = vmatprep.subr.mxu0 %v60
    %1372 = vmatpush1.msra.mxu0 %v59
    %1373 = vmatprep.subr.mxu0 %v56
    %1374 = vmatpush1.msra.mxu0 %v55
    %1375 = vmatprep.subr.mxu0 %v52
    %1376 = vmatpush1.msra.mxu0 %v51
    %1377 = vmatprep.subr.mxu0 %v48
    %1378 = vmatpush1.msra.mxu0 %v47
    %1379 = vmatprep.subr.mxu0 %v44
    %1380 = vmatpush1.msra.mxu0 %v43
    %1381 = vmatprep.subr.mxu0 0.0
    %1382 = vmatpush2.msra.mxu0 0.0
    %1383 = vmatprep.subr.mxu0 0.0
    %1384 = vmatpush2.msra.mxu0 0.0
    %1385 = vmatprep.subr.mxu0 0.0
    %1386 = vmatpush2.msra.mxu0 0.0
    %1387 = vmatprep.subr.mxu0 0.0
    %1388 = vmatpush2.msra.mxu0 0.0
    %1389 = vmatprep.subr.mxu0 0.0
    %1390 = vmatpush2.msra.mxu0 0.0
    %1391 = vmatprep.subr.mxu0 0.0
    %1392 = vmatpush2.msra.mxu0 0.0
    %1393 = vmatprep.subr.mxu0 0.0
    %1394 = vmatpush2.msra.mxu0 0.0
    %1395 = vmatprep.subr.mxu0 0.0
    %1396 = vmatpush2.msra.mxu0 0.0
    %1397 = vmatprep.subr.mxu0 0.0
    %1398 = vmatpush2.msra.mxu0 0.0
    %1399 = vmatprep.subr.mxu0 0.0
    %1400 = vmatpush2.msra.mxu0 0.0
    %1401 = vmatprep.subr.mxu0 0.0
    %1402 = vmatpush2.msra.mxu0 0.0
    %1403 = vmatprep.subr.mxu0 0.0
    %1404 = vmatpush2.msra.mxu0 0.0
    %1405 = vmatprep.subr.mxu0 0.0
    %1406 = vmatpush2.msra.mxu0 0.0
    %1407 = vmatprep.subr.mxu0 0.0
    %1408 = vmatpush2.msra.mxu0 0.0
    %1409 = vmatprep.subr.mxu0 0.0
    %1410 = vmatpush2.msra.mxu0 0.0
    %1411 = vmatprep.subr.mxu0 0.0
    %1412 = vmatpush2.msra.mxu0 0.0
    %1413 = vmatprep.mubr.f32.mxu0 0.0
    %1414 = vmatmul.mubr.f32.gmra.mxu0 %v1341
    %v1415 = vpop.f32.mrf.mxu0
    %v1416 = vadd.f32 %v1345, %v1415
    %v1417 = vpop.f32.mrf.mxu0
    %v1418 = vadd.f32 %v1346, %v1417
    %1419 = vdwg.mxu0
    %1420 = vmatprep.subr.mxu0 %v106
    %1421 = vmatpush1.msra.mxu0 %v105
    %1422 = vmatprep.subr.mxu0 %v102
    %1423 = vmatpush1.msra.mxu0 %v101
    %1424 = vmatprep.subr.mxu0 %v98
    %1425 = vmatpush1.msra.mxu0 %v97
    %1426 = vmatprep.subr.mxu0 %v94
    %1427 = vmatpush1.msra.mxu0 %v93
    %1428 = vmatprep.subr.mxu0 %v90
    %1429 = vmatpush1.msra.mxu0 %v89
    %1430 = vmatprep.subr.mxu0 %v86
    %1431 = vmatpush1.msra.mxu0 %v85
    %1432 = vmatprep.subr.mxu0 %v82
    %1433 = vmatpush1.msra.mxu0 %v81
    %1434 = vmatprep.subr.mxu0 %v78
    %1435 = vmatpush1.msra.mxu0 %v77
    %1436 = vmatprep.subr.mxu0 %v74
    %1437 = vmatpush1.msra.mxu0 %v73
    %1438 = vmatprep.subr.mxu0 %v70
    %1439 = vmatpush1.msra.mxu0 %v69
    %1440 = vmatprep.subr.mxu0 %v66
    %1441 = vmatpush1.msra.mxu0 %v65
    %1442 = vmatprep.subr.mxu0 %v62
    %1443 = vmatpush1.msra.mxu0 %v61
    %1444 = vmatprep.subr.mxu0 %v58
    %1445 = vmatpush1.msra.mxu0 %v57
    %1446 = vmatprep.subr.mxu0 %v54
    %1447 = vmatpush1.msra.mxu0 %v53
    %1448 = vmatprep.subr.mxu0 %v50
    %1449 = vmatpush1.msra.mxu0 %v49
    %1450 = vmatprep.subr.mxu0 %v46
    %1451 = vmatpush1.msra.mxu0 %v45
    %1452 = vmatprep.subr.mxu0 0.0
    %1453 = vmatpush2.msra.mxu0 0.0
    %1454 = vmatprep.subr.mxu0 0.0
    %1455 = vmatpush2.msra.mxu0 0.0
    %1456 = vmatprep.subr.mxu0 0.0
    %1457 = vmatpush2.msra.mxu0 0.0
    %1458 = vmatprep.subr.mxu0 0.0
    %1459 = vmatpush2.msra.mxu0 0.0
    %1460 = vmatprep.subr.mxu0 0.0
    %1461 = vmatpush2.msra.mxu0 0.0
    %1462 = vmatprep.subr.mxu0 0.0
    %1463 = vmatpush2.msra.mxu0 0.0
    %1464 = vmatprep.subr.mxu0 0.0
    %1465 = vmatpush2.msra.mxu0 0.0
    %1466 = vmatprep.subr.mxu0 0.0
    %1467 = vmatpush2.msra.mxu0 0.0
    %1468 = vmatprep.subr.mxu0 0.0
    %1469 = vmatpush2.msra.mxu0 0.0
    %1470 = vmatprep.subr.mxu0 0.0
    %1471 = vmatpush2.msra.mxu0 0.0
    %1472 = vmatprep.subr.mxu0 0.0
    %1473 = vmatpush2.msra.mxu0 0.0
    %1474 = vmatprep.subr.mxu0 0.0
    %1475 = vmatpush2.msra.mxu0 0.0
    %1476 = vmatprep.subr.mxu0 0.0
    %1477 = vmatpush2.msra.mxu0 0.0
    %1478 = vmatprep.subr.mxu0 0.0
    %1479 = vmatpush2.msra.mxu0 0.0
    %1480 = vmatprep.subr.mxu0 0.0
    %1481 = vmatpush2.msra.mxu0 0.0
    %1482 = vmatprep.subr.mxu0 0.0
    %1483 = vmatpush2.msra.mxu0 0.0
    %1484 = vmatprep.mubr.f32.mxu0 0.0
    %1485 = vmatmul.mubr.f32.gmra.mxu0 %v1341
    %v1486 = vpop.f32.mrf.mxu0
    %v1487 = vadd.f32 %v1347, %v1486
    %v1488 = vpop.f32.mrf.mxu0
    %v1489 = vadd.f32 %v1348, %v1488
    %1490 = vdwg.mxu0
    %v1491 = vmul.f32 %v1416, 0.5
    %v1492 = vmul.f32 %v1418, 0.5
    %v1493 = vmul.f32 %v1487, 0.5
    %v1494 = vmul.f32 %v1489, 0.5
    %v1495 = vtanh.pop %v1491
    %v1496 = vtanh.pop %v1492
    %v1497 = vtanh.pop %v1493
    %v1498 = vtanh.pop %v1494
    %v1499 = vmul.f32 %v1495, 0.5
    %v1500 = vmul.f32 %v1496, 0.5
    %v1501 = vmul.f32 %v1497, 0.5
    %v1502 = vadd.f32 %v1499, 0.5
    %v1503 = vadd.f32 %v1500, 0.5
    %v1504 = vadd.f32 %v1501, 0.5
    %v1505 = vmul.f32 %v1503, %v1339
    %v1506 = vmul.f32 %v1502, %v1498
    %v1507 = vadd.f32 %v1505, %v1506
    %v1508 = vtanh.pop %v1507
    %v1509 = vmul.f32 %v1504, %v1508
    %s1510 = smul.u32 8, 4
    %s1511 = smul.addr %s1510, 8
    %s1512 = scalar_lea.vmem [#allocation2], %s1511
    %v1513 = vld [vmem:[%s1512] sm:$0xff]
    %v1514 = vld [vmem:[%s1512 + $0x8] sm:$0xff]
    %v1515 = vld [vmem:[%s1512 + $0x10] sm:$0xff]
    %v1516 = vld [vmem:[%s1512 + $0x18] sm:$0xff]
    %1517 = vmatprep.subr.mxu0 %v104
    %1518 = vmatpush1.msra.mxu0 %v103
    %1519 = vmatprep.subr.mxu0 %v100
    %1520 = vmatpush1.msra.mxu0 %v99
    %1521 = vmatprep.subr.mxu0 %v96
    %1522 = vmatpush1.msra.mxu0 %v95
    %1523 = vmatprep.subr.mxu0 %v92
    %1524 = vmatpush1.msra.mxu0 %v91
    %1525 = vmatprep.subr.mxu0 %v88
    %1526 = vmatpush1.msra.mxu0 %v87
    %1527 = vmatprep.subr.mxu0 %v84
    %1528 = vmatpush1.msra.mxu0 %v83
    %1529 = vmatprep.subr.mxu0 %v80
    %1530 = vmatpush1.msra.mxu0 %v79
    %1531 = vmatprep.subr.mxu0 %v76
    %1532 = vmatpush1.msra.mxu0 %v75
    %1533 = vmatprep.subr.mxu0 %v72
    %1534 = vmatpush1.msra.mxu0 %v71
    %1535 = vmatprep.subr.mxu0 %v68
    %1536 = vmatpush1.msra.mxu0 %v67
    %1537 = vmatprep.subr.mxu0 %v64
    %1538 = vmatpush1.msra.mxu0 %v63
    %1539 = vmatprep.subr.mxu0 %v60
    %1540 = vmatpush1.msra.mxu0 %v59
    %1541 = vmatprep.subr.mxu0 %v56
    %1542 = vmatpush1.msra.mxu0 %v55
    %1543 = vmatprep.subr.mxu0 %v52
    %1544 = vmatpush1.msra.mxu0 %v51
    %1545 = vmatprep.subr.mxu0 %v48
    %1546 = vmatpush1.msra.mxu0 %v47
    %1547 = vmatprep.subr.mxu0 %v44
    %1548 = vmatpush1.msra.mxu0 %v43
    %1549 = vmatprep.subr.mxu0 0.0
    %1550 = vmatpush2.msra.mxu0 0.0
    %1551 = vmatprep.subr.mxu0 0.0
    %1552 = vmatpush2.msra.mxu0 0.0
    %1553 = vmatprep.subr.mxu0 0.0
    %1554 = vmatpush2.msra.mxu0 0.0
    %1555 = vmatprep.subr.mxu0 0.0
    %1556 = vmatpush2.msra.mxu0 0.0
    %1557 = vmatprep.subr.mxu0 0.0
    %1558 = vmatpush2.msra.mxu0 0.0
    %1559 = vmatprep.subr.mxu0 0.0
    %1560 = vmatpush2.msra.mxu0 0.0
    %1561 = vmatprep.subr.mxu0 0.0
    %1562 = vmatpush2.msra.mxu0 0.0
    %1563 = vmatprep.subr.mxu0 0.0
    %1564 = vmatpush2.msra.mxu0 0.0
    %1565 = vmatprep.subr.mxu0 0.0
    %1566 = vmatpush2.msra.mxu0 0.0
    %1567 = vmatprep.subr.mxu0 0.0
    %1568 = vmatpush2.msra.mxu0 0.0
    %1569 = vmatprep.subr.mxu0 0.0
    %1570 = vmatpush2.msra.mxu0 0.0
    %1571 = vmatprep.subr.mxu0 0.0
    %1572 = vmatpush2.msra.mxu0 0.0
    %1573 = vmatprep.subr.mxu0 0.0
    %1574 = vmatpush2.msra.mxu0 0.0
    %1575 = vmatprep.subr.mxu0 0.0
    %1576 = vmatpush2.msra.mxu0 0.0
    %1577 = vmatprep.subr.mxu0 0.0
    %1578 = vmatpush2.msra.mxu0 0.0
    %1579 = vmatprep.subr.mxu0 0.0
    %1580 = vmatpush2.msra.mxu0 0.0
    %1581 = vmatprep.mubr.f32.mxu0 0.0
    %1582 = vmatmul.mubr.f32.gmra.mxu0 %v1509
    %v1583 = vpop.f32.mrf.mxu0
    %v1584 = vadd.f32 %v1513, %v1583
    %v1585 = vpop.f32.mrf.mxu0
    %v1586 = vadd.f32 %v1514, %v1585
    %1587 = vdwg.mxu0
    %1588 = vmatprep.subr.mxu0 %v106
    %1589 = vmatpush1.msra.mxu0 %v105
    %1590 = vmatprep.subr.mxu0 %v102
    %1591 = vmatpush1.msra.mxu0 %v101
    %1592 = vmatprep.subr.mxu0 %v98
    %1593 = vmatpush1.msra.mxu0 %v97
    %1594 = vmatprep.subr.mxu0 %v94
    %1595 = vmatpush1.msra.mxu0 %v93
    %1596 = vmatprep.subr.mxu0 %v90
    %1597 = vmatpush1.msra.mxu0 %v89
    %1598 = vmatprep.subr.mxu0 %v86
    %1599 = vmatpush1.msra.mxu0 %v85
    %1600 = vmatprep.subr.mxu0 %v82
    %1601 = vmatpush1.msra.mxu0 %v81
    %1602 = vmatprep.subr.mxu0 %v78
    %1603 = vmatpush1.msra.mxu0 %v77
    %1604 = vmatprep.subr.mxu0 %v74
    %1605 = vmatpush1.msra.mxu0 %v73
    %1606 = vmatprep.subr.mxu0 %v70
    %1607 = vmatpush1.msra.mxu0 %v69
    %1608 = vmatprep.subr.mxu0 %v66
    %1609 = vmatpush1.msra.mxu0 %v65
    %1610 = vmatprep.subr.mxu0 %v62
    %1611 = vmatpush1.msra.mxu0 %v61
    %1612 = vmatprep.subr.mxu0 %v58
    %1613 = vmatpush1.msra.mxu0 %v57
    %1614 = vmatprep.subr.mxu0 %v54
    %1615 = vmatpush1.msra.mxu0 %v53
    %1616 = vmatprep.subr.mxu0 %v50
    %1617 = vmatpush1.msra.mxu0 %v49
    %1618 = vmatprep.subr.mxu0 %v46
    %1619 = vmatpush1.msra.mxu0 %v45
    %1620 = vmatprep.subr.mxu0 0.0
    %1621 = vmatpush2.msra.mxu0 0.0
    %1622 = vmatprep.subr.mxu0 0.0
    %1623 = vmatpush2.msra.mxu0 0.0
    %1624 = vmatprep.subr.mxu0 0.0
    %1625 = vmatpush2.msra.mxu0 0.0
    %1626 = vmatprep.subr.mxu0 0.0
    %1627 = vmatpush2.msra.mxu0 0.0
    %1628 = vmatprep.subr.mxu0 0.0
    %1629 = vmatpush2.msra.mxu0 0.0
    %1630 = vmatprep.subr.mxu0 0.0
    %1631 = vmatpush2.msra.mxu0 0.0
    %1632 = vmatprep.subr.mxu0 0.0
    %1633 = vmatpush2.msra.mxu0 0.0
    %1634 = vmatprep.subr.mxu0 0.0
    %1635 = vmatpush2.msra.mxu0 0.0
    %1636 = vmatprep.subr.mxu0 0.0
    %1637 = vmatpush2.msra.mxu0 0.0
    %1638 = vmatprep.subr.mxu0 0.0
    %1639 = vmatpush2.msra.mxu0 0.0
    %1640 = vmatprep.subr.mxu0 0.0
    %1641 = vmatpush2.msra.mxu0 0.0
    %1642 = vmatprep.subr.mxu0 0.0
    %1643 = vmatpush2.msra.mxu0 0.0
    %1644 = vmatprep.subr.mxu0 0.0
    %1645 = vmatpush2.msra.mxu0 0.0
    %1646 = vmatprep.subr.mxu0 0.0
    %1647 = vmatpush2.msra.mxu0 0.0
    %1648 = vmatprep.subr.mxu0 0.0
    %1649 = vmatpush2.msra.mxu0 0.0
    %1650 = vmatprep.subr.mxu0 0.0
    %1651 = vmatpush2.msra.mxu0 0.0
    %1652 = vmatprep.mubr.f32.mxu0 0.0
    %1653 = vmatmul.mubr.f32.gmra.mxu0 %v1509
    %v1654 = vpop.f32.mrf.mxu0
    %v1655 = vadd.f32 %v1515, %v1654
    %v1656 = vpop.f32.mrf.mxu0
    %v1657 = vadd.f32 %v1516, %v1656
    %1658 = vdwg.mxu0
    %v1659 = vmul.f32 %v1584, 0.5
    %v1660 = vmul.f32 %v1586, 0.5
    %v1661 = vmul.f32 %v1655, 0.5
    %v1662 = vmul.f32 %v1657, 0.5
    %v1663 = vtanh.pop %v1659
    %v1664 = vtanh.pop %v1660
    %v1665 = vtanh.pop %v1661
    %v1666 = vtanh.pop %v1662
    %v1667 = vmul.f32 %v1663, 0.5
    %v1668 = vmul.f32 %v1664, 0.5
    %v1669 = vmul.f32 %v1665, 0.5
    %v1670 = vadd.f32 %v1667, 0.5
    %v1671 = vadd.f32 %v1668, 0.5
    %v1672 = vadd.f32 %v1669, 0.5
    %v1673 = vmul.f32 %v1671, %v1507
    %v1674 = vmul.f32 %v1670, %v1666
    %v1675 = vadd.f32 %v1673, %v1674
    %v1676 = vtanh.pop %v1675
    %v1677 = vmul.f32 %v1672, %v1676
    %v1678 = vld [vmem:[#allocation6] sm:$0xff]
    %v1679 = vld [vmem:[#allocation6 + $0x8] sm:$0xff]
    %v1680 = vld [vmem:[#allocation6 + $0x10] sm:$0xff]
    %v1681 = vld [vmem:[#allocation6 + $0x18] sm:$0xff]
    %v1682 = vld [vmem:[#allocation6 + $0x20] sm:$0xff]
    %v1683 = vld [vmem:[#allocation6 + $0x28] sm:$0xff]
    %v1684 = vld [vmem:[#allocation6 + $0x30] sm:$0xff]
    %v1685 = vld [vmem:[#allocation6 + $0x38] sm:$0xff]
    %v1686 = vld [vmem:[#allocation6 + $0x40] sm:$0xff]
    %v1687 = vld [vmem:[#allocation6 + $0x48] sm:$0xff]
    %v1688 = vld [vmem:[#allocation6 + $0x50] sm:$0xff]
    %v1689 = vld [vmem:[#allocation6 + $0x58] sm:$0xff]
    %v1690 = vld [vmem:[#allocation6 + $0x60] sm:$0xff]
    %v1691 = vld [vmem:[#allocation6 + $0x68] sm:$0xff]
    %v1692 = vld [vmem:[#allocation6 + $0x70] sm:$0xff]
    %v1693 = vld [vmem:[#allocation6 + $0x78] sm:$0xff]
    %v1694 = vld [vmem:[#allocation6 + $0x80] sm:$0x1]
    %v1695 = vlaneseq
    %v1696 = vshrl.u32 %v1695, 7
    %v1697 = vsub.s32 0, %v1696
    %v1698 = vrot.slane %v1694, %v1697
    %1699 = vmatprep.subr.mxu0 0.0
    %1700 = vmatpush1.msra.mxu0 %v1693
    %1701 = vmatprep.subr.mxu0 0.0
    %1702 = vmatpush1.msra.mxu0 %v1692
    %1703 = vmatprep.subr.mxu0 0.0
    %1704 = vmatpush1.msra.mxu0 %v1691
    %1705 = vmatprep.subr.mxu0 0.0
    %1706 = vmatpush1.msra.mxu0 %v1690
    %1707 = vmatprep.subr.mxu0 0.0
    %1708 = vmatpush1.msra.mxu0 %v1689
    %1709 = vmatprep.subr.mxu0 0.0
    %1710 = vmatpush1.msra.mxu0 %v1688
    %1711 = vmatprep.subr.mxu0 0.0
    %1712 = vmatpush1.msra.mxu0 %v1687
    %1713 = vmatprep.subr.mxu0 0.0
    %1714 = vmatpush1.msra.mxu0 %v1686
    %1715 = vmatprep.subr.mxu0 0.0
    %1716 = vmatpush1.msra.mxu0 %v1685
    %1717 = vmatprep.subr.mxu0 0.0
    %1718 = vmatpush1.msra.mxu0 %v1684
    %1719 = vmatprep.subr.mxu0 0.0
    %1720 = vmatpush1.msra.mxu0 %v1683
    %1721 = vmatprep.subr.mxu0 0.0
    %1722 = vmatpush1.msra.mxu0 %v1682
    %1723 = vmatprep.subr.mxu0 0.0
    %1724 = vmatpush1.msra.mxu0 %v1681
    %1725 = vmatprep.subr.mxu0 0.0
    %1726 = vmatpush1.msra.mxu0 %v1680
    %1727 = vmatprep.subr.mxu0 0.0
    %1728 = vmatpush1.msra.mxu0 %v1679
    %1729 = vmatprep.subr.mxu0 0.0
    %1730 = vmatpush1.msra.mxu0 %v1678
    %1731 = vmatprep.subr.mxu0 0.0
    %1732 = vmatpush2.msra.mxu0 0.0
    %1733 = vmatprep.subr.mxu0 0.0
    %1734 = vmatpush2.msra.mxu0 0.0
    %1735 = vmatprep.subr.mxu0 0.0
    %1736 = vmatpush2.msra.mxu0 0.0
    %1737 = vmatprep.subr.mxu0 0.0
    %1738 = vmatpush2.msra.mxu0 0.0
    %1739 = vmatprep.subr.mxu0 0.0
    %1740 = vmatpush2.msra.mxu0 0.0
    %1741 = vmatprep.subr.mxu0 0.0
    %1742 = vmatpush2.msra.mxu0 0.0
    %1743 = vmatprep.subr.mxu0 0.0
    %1744 = vmatpush2.msra.mxu0 0.0
    %1745 = vmatprep.subr.mxu0 0.0
    %1746 = vmatpush2.msra.mxu0 0.0
    %1747 = vmatprep.subr.mxu0 0.0
    %1748 = vmatpush2.msra.mxu0 0.0
    %1749 = vmatprep.subr.mxu0 0.0
    %1750 = vmatpush2.msra.mxu0 0.0
    %1751 = vmatprep.subr.mxu0 0.0
    %1752 = vmatpush2.msra.mxu0 0.0
    %1753 = vmatprep.subr.mxu0 0.0
    %1754 = vmatpush2.msra.mxu0 0.0
    %1755 = vmatprep.subr.mxu0 0.0
    %1756 = vmatpush2.msra.mxu0 0.0
    %1757 = vmatprep.subr.mxu0 0.0
    %1758 = vmatpush2.msra.mxu0 0.0
    %1759 = vmatprep.subr.mxu0 0.0
    %1760 = vmatpush2.msra.mxu0 0.0
    %1761 = vmatprep.subr.mxu0 0.0
    %1762 = vmatpush2.msra.mxu0 0.0
    %1763 = vmatprep.mubr.f32.mxu0 0.0
    %1764 = vmatmul.mubr.f32.gmra.mxu0 %v1677
    %v1765 = vpop.f32.mrf.mxu0
    %v1766 = vadd.f32 %v1698, %v1765
    %v1767 = vpop.f32.mrf.mxu0
    %1768 = vdwg.mxu0
    %1769 = vst [vmem:[#allocation8] sm:$0xff] %v1766
    // Predicated region
    $region22: #{tpu_custom_call.1} parent=1 // pred_check
      _
    $region23: #{tpu_custom_call.1} parent=1 // pred_check_branch
      %1771 = sbr.rel (0) target = $region25
    $region24: #{tpu_custom_call.1} parent=1 // pred_region
      %s1773 = ssub.s32 128, 128
      %1774 = vsyncadd [#allocation5], %s1773
      %s1776 = sshll.u32 [#allocation8], 4
      %s1777 = int_to_ptr.vmem [resolvable:$true] %s1776
      %1779 = dma.vmem_to_hbm [thread:$0]  %s1777, 128, %s3, [#allocation5]
    $region25: #{tpu_custom_call.1} parent=1 // pred_fallthru
      _
    // Predicated region
    $region26: #{tpu_custom_call.1} parent=1 // pred_check
      _
    $region27: #{tpu_custom_call.1} parent=1 // pred_check_branch
      %1781 = sbr.rel (0) target = $region29
    $region28: #{tpu_custom_call.1} parent=1 // pred_region
      %1782 = dma.done [#allocation5], 128
    $region29: #{tpu_custom_call.1} parent=1 // pred_fallthru
      _
    %1783 = vsyncpa [#allocation4], 1
    %1784 = vsyncpa [#allocation7], 1
    %1785 = vsyncpa [#allocation5], 1

</llo_original>
